<compile_context>
chip_gen: v7x
topology: tpu7x:2x2x1
jax: 0.10.0
libtpu: 0.0.40
codegen_flags: <defaults>
</compile_context>

<pallas_src>
import functools

import jax
import jax.numpy as jnp
from jax import lax
from jax.experimental import pallas as pl
from jax.experimental.pallas import tpu as pltpu


def _round_up(x, m):
    return (x + m - 1) // m * m


def _cdiv(a, b):
    return (a + b - 1) // b


def _pad_to(a, axis, target):
    pad = target - a.shape[axis]
    if pad == 0:
        return a
    widths = [(0, 0)] * a.ndim
    widths[axis] = (0, pad)
    return jnp.pad(a, widths)


def _default_tile_rows():
    # v7x: 64 MiB physical VMEM -> keep 256-row tiles.
    # v5e/v6e: 128 MiB VMEM -> 512-row tiles (per-step overhead amortization).
    try:
        kind = jax.devices()[0].device_kind.lower()
    except Exception:
        return 256
    if "v7" in kind or "7x" in kind:
        return 256
    return 512


def _weight_spec(shape, index_map, single_buffer):
    """BlockSpec for operands whose block index is constant across the inner
    (row-tile) grid axis.  Pallas already skips their re-fetch DMA; the
    Buffered(1) hint additionally drops the useless second VMEM buffer.
    Falls back to a plain BlockSpec if pipeline_mode is unavailable."""
    if single_buffer:
        try:
            return pl.BlockSpec(shape, index_map, pipeline_mode=pl.Buffered(1))
        except Exception:
            pass
    return pl.BlockSpec(shape, index_map)


# ----------------------------------------------------------------------------
# Pallas kernel: fused Linear -> GELU -> Linear -> LayerNorm over a row tile,
# for one of the two (face / body) projection heads selected by grid axis 0.
# Matmuls run bf16 x bf16 on the MXU with f32 accumulation; bias / GELU /
# LayerNorm happen on the f32 accumulator.
# ----------------------------------------------------------------------------
def _proj_kernel(x_ref, w1_ref, b1_ref, w2_ref, dvec_ref, o_ref, *, d_valid):
    x = x_ref[0].astype(jnp.bfloat16)                  # (tm, Hp)
    w1 = w1_ref[0]                                     # (Hp, Hp)  bf16

    # Linear 1 (MXU) + bias (f32)
    h = jnp.dot(x, w1, preferred_element_type=jnp.float32)
    h = h + b1_ref[0]                                  # (1, Hp) broadcast, f32

    # GELU (tanh approximation -> EUP transcendental slot)
    h = jax.nn.gelu(h, approximate=True)

    # Linear 2 (MXU, bf16 inputs, f32 acc) + bias
    y = jnp.dot(h.astype(jnp.bfloat16), w2_ref[0],
                preferred_element_type=jnp.float32)    # (tm, Dp)
    b2 = dvec_ref[0, 0:1, :]                           # (1, Dp) f32
    gamma = dvec_ref[0, 1:2, :]
    beta = dvec_ref[0, 2:3, :]
    y = y + b2

    # LayerNorm over the first d_valid feature columns.  Columns >= d_valid of
    # y are exactly zero (zero-padded W2 columns and b2), so:
    #   mean = sum(y) / d_valid                                (no mask needed)
    #   sum_all((y-mean)^2) = sum_valid((y-mean)^2) + (Dp-d)*mean^2
    # i.e. the centered variance only needs a scalar correction term.
    dp = y.shape[-1]
    inv_d = 1.0 / float(d_valid)
    mean = jnp.sum(y, axis=-1, keepdims=True) * inv_d
    centered = y - mean
    ssq = jnp.sum(centered * centered, axis=-1, keepdims=True)
    if d_valid != dp:
        ssq = ssq - float(dp - d_valid) * (mean * mean)
    var = ssq * inv_d

    y_hat = centered * lax.rsqrt(var + 1e-5)
    o_ref[0] = (y_hat * gamma + beta).astype(o_ref.dtype)


# ----------------------------------------------------------------------------
# Fused face+body projection wrapper.
# ----------------------------------------------------------------------------
def image_proj_pallas_fused(x_face, x_body, params_face, params_body, *,
                            tile_rows=None, out_dtype=jnp.float32,
                            single_buffer_weights=True):
    """x_face/x_body: (N, S, H). Returns (2, N*S, D) in out_dtype."""
    n, s, h = x_face.shape
    d = params_face[2].shape[1]
    rows = n * s

    hp = _round_up(h, 128)           # lane-dense feature axes
    dp = _round_up(d, 128)

    if tile_rows is None:
        tile_rows = _default_tile_rows()
    tile_rows = max(8, int(tile_rows))

    # Balanced row tiles: split rows into near-equal tiles <= tile_rows
    # (multiple of 8) instead of padding up to a fixed tile size.
    n_tiles = max(1, _cdiv(rows, tile_rows))
    tile = _round_up(_cdiv(rows, n_tiles), 8)
    rows_p = _round_up(rows, tile)
    n_tiles = rows_p // tile

    # Stack face/body on a leading "head" axis; pad (only if needed) and cast
    # to bf16.  Stack+pad+cast fuse into one XLA pass; bf16 halves x DMA.
    x_all = jnp.stack([x_face.reshape(rows, h), x_body.reshape(rows, h)], 0)
    x_all = _pad_to(_pad_to(x_all, 1, rows_p), 2, hp).astype(jnp.bfloat16)

    def stack(i):
        return jnp.stack([params_face[i], params_body[i]], axis=0)

    w1 = _pad_to(_pad_to(stack(0), 1, hp), 2, hp).astype(jnp.bfloat16)
    b1 = _pad_to(stack(1), 1, hp).reshape(2, 1, hp).astype(jnp.float32)
    w2 = _pad_to(_pad_to(stack(2), 1, hp), 2, dp).astype(jnp.bfloat16)
    # Pack b2 / gamma / beta into one (2, 3, Dp) operand: one DMA + one
    # sublane-padded VMEM buffer instead of three.
    dvec = jnp.stack([_pad_to(stack(3), 1, dp),
                      _pad_to(stack(4), 1, dp),
                      _pad_to(stack(5), 1, dp)], axis=1).astype(jnp.float32)

    out_bytes = jnp.dtype(out_dtype).itemsize
    wb = 1 if single_buffer_weights else 2

    # VMEM budget: buffered blocks + in-kernel intermediates, small margin,
    # capped at 46 MiB so v7x (64 MiB physical) keeps headroom for Mosaic
    # internal scratch.  NOTE: v5e scoped default is 16 MiB — at real sizes
    # (H=1280, D=2048) even single-buffered weights approach it, so this
    # explicit vmem_limit_bytes must not be dropped.
    need = (2 * tile * hp * 2                 # x tiles (bf16, double-buffered)
            + wb * hp * hp * 2                # W1 (bf16)
            + wb * 8 * hp * 4                 # b1 (f32, sublane-padded)
            + wb * hp * dp * 2                # W2 (bf16)
            + wb * 8 * dp * 4                 # packed b2/gamma/beta (f32)
            + 2 * tile * dp * out_bytes       # out tiles (double-buffered)
            + tile * hp * (4 + 2 + 2)         # h f32, h bf16, x bf16 copies
            + tile * dp * (4 + 4)             # y f32, centered/out f32
            + 8 * tile * 4)                   # LN row stats
    vmem_limit = int(min(max(need + (1 << 20), 8 << 20), 46 << 20))

    # Advisory cost estimate so XLA schedules the downstream concatenate /
    # slice assembly around (not after) the kernel.
    flops = 2 * 2 * rows * h * (h + d)
    transcendentals = 2 * rows * h
    bytes_accessed = (2 * rows * h * 2 + 2 * (h * h + h * d) * 2
                      + 2 * (h + 3 * d) * 4 + 2 * rows * d * out_bytes)

    kernel = functools.partial(_proj_kernel, d_valid=d)

    out = pl.pallas_call(
        kernel,
        out_shape=jax.ShapeDtypeStruct((2, rows_p, dp), out_dtype),
        grid_spec=pltpu.PrefetchScalarGridSpec(
            num_scalar_prefetch=0,
            # Grid order (head, row-tile) with rows innermost: weight block
            # indices don't change across consecutive steps, so their DMAs
            # are not re-issued per row tile.  Head is the leading "parallel"
            # axis so v7x can pin one projection head per TensorCore.
            grid=(2, n_tiles),
            in_specs=[
                pl.BlockSpec((1, tile, hp), lambda p, i: (p, i, 0)),      # x
                _weight_spec((1, hp, hp), lambda p, i: (p, 0, 0),
                             single_buffer_weights),                      # W1
                _weight_spec((1, 1, hp), lambda p, i: (p, 0, 0),
                             single_buffer_weights),                      # b1
                _weight_spec((1, hp, dp), lambda p, i: (p, 0, 0),
                             single_buffer_weights),                      # W2
                _weight_spec((1, 3, dp), lambda p, i: (p, 0, 0),
                             single_buffer_weights),                      # b2/g/beta
            ],
            out_specs=pl.BlockSpec((1, tile, dp), lambda p, i: (p, i, 0)),
        ),
        compiler_params=pltpu.CompilerParams(
            dimension_semantics=("parallel", "parallel"),
            vmem_limit_bytes=vmem_limit,
        ),
        cost_estimate=pl.CostEstimate(flops=int(flops),
                                      transcendentals=int(transcendentals),
                                      bytes_accessed=int(bytes_accessed)),
    )(x_all, w1, b1, w2, dvec)

    # Strip row / feature padding.
    return out[:, :rows, :d]


# ----------------------------------------------------------------------------
# IPAdapter.forward hot path (token projection + assembly).
# ----------------------------------------------------------------------------
def ip_adapter_forward(encoder_hidden_states,
                       image_embeds_face,
                       image_embeds_body,
                       params_face,
                       params_body,
                       num_tokens=16,
                       tile_rows=None,
                       single_buffer_weights=True):
    b, m, s, h = image_embeds_face.shape
    assert s == num_tokens, "MLPProjModel path assumes img_seq_len == num_tokens"

    face = image_embeds_face.reshape(b * m, s, h)
    body = image_embeds_body.reshape(b * m, s, h)

    # One fused Pallas call for both projection heads.  Output is emitted in
    # the encoder dtype (bf16 downstream halves store + assembly traffic).
    proj = image_proj_pallas_fused(
        face, body, params_face, params_body,
        tile_rows=tile_rows, out_dtype=encoder_hidden_states.dtype,
        single_buffer_weights=single_buffer_weights)
    d = proj.shape[-1]

    ip_tokens_face = proj[0].reshape(b, m * num_tokens, d)
    ip_tokens_body = proj[1].reshape(b, m * num_tokens, d)

    # chunk(2, dim=1)
    half = (m * num_tokens) // 2
    face0, face1 = ip_tokens_face[:, :half, :], ip_tokens_face[:, half:, :]
    body0, body1 = ip_tokens_body[:, :half, :], ip_tokens_body[:, half:, :]

    person_0 = jnp.concatenate([face0, face0, body0], axis=1)
    person_1 = jnp.concatenate([face1, face1, body1], axis=1)

    encoder_hidden_states_all = jnp.concatenate(
        [encoder_hidden_states, person_0,
         encoder_hidden_states, person_1,
         encoder_hidden_states, person_0], axis=1)

    # TODO(synk): controlnet + unet calls (external diffusers models) omitted;
    # encoder_hidden_states_all is the tensor they would consume.
    return encoder_hidden_states_all


# ----------------------------------------------------------------------------
# Pure-JAX reference (f32) for correctness checking.
# ----------------------------------------------------------------------------
def _reference_forward(encoder_hidden_states, image_embeds_face,
                       image_embeds_body, params_face, params_body, num_tokens):
    def proj(x, params):
        w1, b1, w2, b2, g, beta = params
        hh = jax.nn.gelu(x @ w1 + b1, approximate=True)
        y = hh @ w2 + b2
        mean = y.mean(-1, keepdims=True)
        var = ((y - mean) ** 2).mean(-1, keepdims=True)
        return (y - mean) * lax.rsqrt(var + 1e-5) * g + beta

    b, m, s, h = image_embeds_face.shape
    face = proj(image_embeds_face.reshape(b * m, s, h), params_face)
    body = proj(image_embeds_body.reshape(b * m, s, h), params_body)
    d = face.shape[-1]
    face = face.reshape(b, m * num_tokens, d)
    body = body.reshape(b, m * num_tokens, d)
    half = (m * num_tokens) // 2
    f0, f1 = face[:, :half], face[:, half:]
    b0, b1 = body[:, :half], body[:, half:]
    p0 = jnp.concatenate([f0, f0, b0], axis=1)
    p1 = jnp.concatenate([f1, f1, b1], axis=1)
    return jnp.concatenate([encoder_hidden_states, p0,
                            encoder_hidden_states, p1,
                            encoder_hidden_states, p0], axis=1)


# ----------------------------------------------------------------------------
# Deterministic parameter init + demo run.
# ----------------------------------------------------------------------------
def init_proj_params(key, hidden_dim, cross_dim, dtype=jnp.float32):
    k1, k2, k3, k4, k5, k6 = jax.random.split(key, 6)
    scale = 1.0 / (hidden_dim ** 0.5)
    w1 = jax.random.normal(k1, (hidden_dim, hidden_dim), dtype) * scale
    b1 = jax.random.normal(k3, (hidden_dim,), dtype) * 0.02
    w2 = jax.random.normal(k2, (hidden_dim, cross_dim), dtype) * scale
    b2 = jax.random.normal(k4, (cross_dim,), dtype) * 0.02
    gamma = 1.0 + 0.1 * jax.random.normal(k5, (cross_dim,), dtype)
    beta = 0.02 * jax.random.normal(k6, (cross_dim,), dtype)
    return (w1, b1, w2, b2, gamma, beta)


if __name__ == "__main__":
    key = jax.random.PRNGKey(0)
    k_face, k_body, k_ef, k_eb, k_txt = jax.random.split(key, 5)

    # Small shapes consistent with the forward:
    batch = 2
    max_num_objects = 2
    num_tokens = 16          # img_seq_len == num_tokens for MLPProjModel
    hidden_dim = 32          # CLIP image embedding dim (small demo; padded to 128)
    cross_dim = 64           # cross-attention dim (small demo; padded to 128)
    text_seq = 8             # text prompt length (small stand-in for 77)

    image_embeds_face = jax.random.normal(
        k_ef, (batch, max_num_objects, num_tokens, hidden_dim), jnp.float32)
    image_embeds_body = jax.random.normal(
        k_eb, (batch, max_num_objects, num_tokens, hidden_dim), jnp.float32)
    encoder_hidden_states = jax.random.normal(
        k_txt, (batch, text_seq, cross_dim), jnp.float32)

    params_face = init_proj_params(k_face, hidden_dim, cross_dim)
    params_body = init_proj_params(k_body, hidden_dim, cross_dim)

    def run(single_buffer_weights):
        fwd = jax.jit(functools.partial(
            ip_adapter_forward, num_tokens=num_tokens,
            single_buffer_weights=single_buffer_weights))
        return jax.block_until_ready(
            fwd(encoder_hidden_states, image_embeds_face, image_embeds_body,
                params_face, params_body))

    try:
        out = run(True)                 # single-buffered weight operands
    except Exception:
        out = run(False)                # fallback: default double-buffering

    # Shape check: 3*text_seq + 3*(2*half_face + half_body)
    half = (max_num_objects * num_tokens) // 2
    expected_seq = 3 * text_seq + 3 * (3 * half)
    assert out.shape == (batch, expected_seq, cross_dim), out.shape
    assert bool(jnp.all(jnp.isfinite(out)))

    # Numerical check vs. pure-JAX f32 reference (kernel uses bf16 matmuls
    # with f32 accumulation -> generous tolerance).
    ref = _reference_forward(encoder_hidden_states, image_embeds_face,
                             image_embeds_body, params_face, params_body,
                             num_tokens)
    max_err = float(jnp.max(jnp.abs(out - ref)))
    assert max_err < 0.1, f"max abs error vs reference too large: {max_err}"

    print("KERNEL_OK")
</pallas_src>

<mosaic_0001>
module attributes {stable_mosaic.version = 11 : i64} {
  func.func @_proj_kernel(%arg0: i32, %arg1: i32, %arg2: memref<1x64x128xbf16, #tpu.memory_space<vmem>>, %arg3: memref<1x128x128xbf16, #tpu.memory_space<vmem>>, %arg4: memref<1x1x128xf32, #tpu.memory_space<vmem>>, %arg5: memref<1x128x128xbf16, #tpu.memory_space<vmem>>, %arg6: memref<1x3x128xf32, #tpu.memory_space<vmem>>, %arg7: memref<1x64x128xf32, #tpu.memory_space<vmem>>) attributes {dimension_semantics = [#tpu.dimension_semantics<parallel>, #tpu.dimension_semantics<parallel>], iteration_bounds = array<i64: 2, 1>, scalar_prefetch = 0 : i64, scratch_operands = 0 : i64, tpu.core_type = #tpu.core_type<tc>, window_params = [{transform_indices = @transform_0, window_bounds = array<i64: 1, 64, 128>}, {pipeline_mode = #tpu.pipeline_mode<synchronous>, transform_indices = @transform_1, window_bounds = array<i64: 1, 128, 128>}, {pipeline_mode = #tpu.pipeline_mode<synchronous>, transform_indices = @transform_2, window_bounds = array<i64: 1, 1, 128>}, {pipeline_mode = #tpu.pipeline_mode<synchronous>, transform_indices = @transform_3, window_bounds = array<i64: 1, 128, 128>}, {pipeline_mode = #tpu.pipeline_mode<synchronous>, transform_indices = @transform_4, window_bounds = array<i64: 1, 3, 128>}, {transform_indices = @transform_5, window_bounds = array<i64: 1, 64, 128>}]} {
    %c0 = arith.constant 0 : index
    %c0_0 = arith.constant 0 : index
    %c0_1 = arith.constant 0 : index
    %0 = vector.load %arg2[%c0, %c0_0, %c0_1] : memref<1x64x128xbf16, #tpu.memory_space<vmem>>, vector<1x64x128xbf16>
    %1 = vector.shape_cast %0 : vector<1x64x128xbf16> to vector<64x128xbf16>
    %c0_2 = arith.constant 0 : index
    %c0_3 = arith.constant 0 : index
    %c0_4 = arith.constant 0 : index
    %2 = vector.load %arg3[%c0_2, %c0_3, %c0_4] : memref<1x128x128xbf16, #tpu.memory_space<vmem>>, vector<1x128x128xbf16>
    %3 = vector.shape_cast %2 : vector<1x128x128xbf16> to vector<128x128xbf16>
    %cst = arith.constant dense<0.000000e+00> : vector<64x128xf32>
    %4 = tpu.matmul %1, %3, %cst {dimension_numbers = #tpu.dot_dimension_numbers<[1], [0], [0], [1], [0, 0, 1, 1], [], []>} : vector<64x128xbf16>, vector<128x128xbf16>, vector<64x128xf32> -> vector<64x128xf32>
    %c0_5 = arith.constant 0 : index
    %c0_6 = arith.constant 0 : index
    %c0_7 = arith.constant 0 : index
    %5 = vector.load %arg4[%c0_5, %c0_6, %c0_7] : memref<1x1x128xf32, #tpu.memory_space<vmem>>, vector<1x1x128xf32>
    %6 = vector.shape_cast %5 : vector<1x1x128xf32> to vector<1x128xf32>
    %7 = vector.broadcast %6 : vector<1x128xf32> to vector<64x128xf32>
    %8 = arith.addf %4, %7 : vector<64x128xf32>
    %9 = arith.mulf %8, %8 : vector<64x128xf32>
    %10 = arith.mulf %8, %9 : vector<64x128xf32>
    %cst_8 = arith.constant 4.471500e-02 : f32
    %11 = vector.broadcast %cst_8 : f32 to vector<64x128xf32>
    %12 = arith.mulf %11, %10 : vector<64x128xf32>
    %13 = arith.addf %8, %12 : vector<64x128xf32>
    %cst_9 = arith.constant 0.797884583 : f32
    %14 = vector.broadcast %cst_9 : f32 to vector<64x128xf32>
    %15 = arith.mulf %14, %13 : vector<64x128xf32>
    %16 = math.tanh %15 : vector<64x128xf32>
    %cst_10 = arith.constant 1.000000e+00 : f32
    %17 = vector.broadcast %cst_10 : f32 to vector<64x128xf32>
    %18 = arith.addf %17, %16 : vector<64x128xf32>
    %cst_11 = arith.constant 5.000000e-01 : f32
    %19 = vector.broadcast %cst_11 : f32 to vector<64x128xf32>
    %20 = arith.mulf %19, %18 : vector<64x128xf32>
    %21 = arith.mulf %8, %20 : vector<64x128xf32>
    %22 = arith.truncf %21 : vector<64x128xf32> to vector<64x128xbf16>
    %c0_12 = arith.constant 0 : index
    %c0_13 = arith.constant 0 : index
    %c0_14 = arith.constant 0 : index
    %23 = vector.load %arg5[%c0_12, %c0_13, %c0_14] : memref<1x128x128xbf16, #tpu.memory_space<vmem>>, vector<1x128x128xbf16>
    %24 = vector.shape_cast %23 : vector<1x128x128xbf16> to vector<128x128xbf16>
    %cst_15 = arith.constant dense<0.000000e+00> : vector<64x128xf32>
    %25 = tpu.matmul %22, %24, %cst_15 {dimension_numbers = #tpu.dot_dimension_numbers<[1], [0], [0], [1], [0, 0, 1, 1], [], []>} : vector<64x128xbf16>, vector<128x128xbf16>, vector<64x128xf32> -> vector<64x128xf32>
    %c0_16 = arith.constant 0 : index
    %c0_17 = arith.constant 0 : index
    %c0_18 = arith.constant 0 : index
    %26 = vector.load %arg6[%c0_16, %c0_17, %c0_18] : memref<1x3x128xf32, #tpu.memory_space<vmem>>, vector<1x1x128xf32>
    %27 = vector.shape_cast %26 : vector<1x1x128xf32> to vector<1x128xf32>
    %c0_19 = arith.constant 0 : index
    %c1 = arith.constant 1 : index
    %c0_20 = arith.constant 0 : index
    %28 = vector.load %arg6[%c0_19, %c1, %c0_20] : memref<1x3x128xf32, #tpu.memory_space<vmem>>, vector<1x1x128xf32>
    %29 = vector.shape_cast %28 : vector<1x1x128xf32> to vector<1x128xf32>
    %c0_21 = arith.constant 0 : index
    %c2 = arith.constant 2 : index
    %c0_22 = arith.constant 0 : index
    %30 = vector.load %arg6[%c0_21, %c2, %c0_22] : memref<1x3x128xf32, #tpu.memory_space<vmem>>, vector<1x1x128xf32>
    %31 = vector.shape_cast %30 : vector<1x1x128xf32> to vector<1x128xf32>
    %32 = vector.broadcast %27 : vector<1x128xf32> to vector<64x128xf32>
    %33 = arith.addf %25, %32 : vector<64x128xf32>
    %cst_23 = arith.constant dense<0.000000e+00> : vector<64xf32>
    %34 = vector.multi_reduction <add>, %33, %cst_23 [1] : vector<64x128xf32> to vector<64xf32>
    %35 = vector.shape_cast %34 : vector<64xf32> to vector<64x1xf32>
    %cst_24 = arith.constant 1.562500e-02 : f32
    %36 = vector.broadcast %cst_24 : f32 to vector<64x1xf32>
    %37 = arith.mulf %35, %36 : vector<64x1xf32>
    %38 = vector.broadcast %37 : vector<64x1xf32> to vector<64x128xf32>
    %39 = arith.subf %33, %38 : vector<64x128xf32>
    %40 = arith.mulf %39, %39 : vector<64x128xf32>
    %cst_25 = arith.constant dense<0.000000e+00> : vector<64xf32>
    %41 = vector.multi_reduction <add>, %40, %cst_25 [1] : vector<64x128xf32> to vector<64xf32>
    %42 = vector.shape_cast %41 : vector<64xf32> to vector<64x1xf32>
    %43 = arith.mulf %37, %37 : vector<64x1xf32>
    %cst_26 = arith.constant 6.400000e+01 : f32
    %44 = vector.broadcast %cst_26 : f32 to vector<64x1xf32>
    %45 = arith.mulf %44, %43 : vector<64x1xf32>
    %46 = arith.subf %42, %45 : vector<64x1xf32>
    %cst_27 = arith.constant 1.562500e-02 : f32
    %47 = vector.broadcast %cst_27 : f32 to vector<64x1xf32>
    %48 = arith.mulf %46, %47 : vector<64x1xf32>
    %cst_28 = arith.constant 9.99999974E-6 : f32
    %49 = vector.broadcast %cst_28 : f32 to vector<64x1xf32>
    %50 = arith.addf %48, %49 : vector<64x1xf32>
    %51 = math.rsqrt %50 : vector<64x1xf32>
    %52 = vector.broadcast %51 : vector<64x1xf32> to vector<64x128xf32>
    %53 = arith.mulf %39, %52 : vector<64x128xf32>
    %54 = vector.broadcast %29 : vector<1x128xf32> to vector<64x128xf32>
    %55 = arith.mulf %53, %54 : vector<64x128xf32>
    %56 = vector.broadcast %31 : vector<1x128xf32> to vector<64x128xf32>
    %57 = arith.addf %55, %56 : vector<64x128xf32>
    %c0_29 = arith.constant 0 : index
    %c0_30 = arith.constant 0 : index
    %c0_31 = arith.constant 0 : index
    %58 = vector.load %arg7[%c0_29, %c0_30, %c0_31] : memref<1x64x128xf32, #tpu.memory_space<vmem>>, vector<1x64x128xf32>
    %59 = vector.shape_cast %58 : vector<1x64x128xf32> to vector<64x128xf32>
    %60 = vector.shape_cast %57 : vector<64x128xf32> to vector<1x64x128xf32>
    tpu.vector_store %arg7[%c0_29, %c0_30, %c0_31], %60 {strides = array<i32>} : memref<1x64x128xf32, #tpu.memory_space<vmem>>, vector<1x64x128xf32>,
    return
  }
  func.func @transform_0(%arg0: i32, %arg1: i32) -> (i32, i32, i32) {
    %c0_i32 = arith.constant 0 : i32
    %c0_i32_0 = arith.constant 0 : i32
    return %arg0, %arg1, %c0_i32 : i32, i32, i32
  }
  func.func @transform_1(%arg0: i32, %arg1: i32) -> (i32, i32, i32) {
    %c0_i32 = arith.constant 0 : i32
    %c0_i32_0 = arith.constant 0 : i32
    %c0_i32_1 = arith.constant 0 : i32
    return %arg0, %c0_i32, %c0_i32_0 : i32, i32, i32
  }
  func.func @transform_2(%arg0: i32, %arg1: i32) -> (i32, i32, i32) {
    %c0_i32 = arith.constant 0 : i32
    %c0_i32_0 = arith.constant 0 : i32
    %c0_i32_1 = arith.constant 0 : i32
    return %arg0, %c0_i32, %c0_i32_0 : i32, i32, i32
  }
  func.func @transform_3(%arg0: i32, %arg1: i32) -> (i32, i32, i32) {
    %c0_i32 = arith.constant 0 : i32
    %c0_i32_0 = arith.constant 0 : i32
    %c0_i32_1 = arith.constant 0 : i32
    return %arg0, %c0_i32, %c0_i32_0 : i32, i32, i32
  }
  func.func @transform_4(%arg0: i32, %arg1: i32) -> (i32, i32, i32) {
    %c0_i32 = arith.constant 0 : i32
    %c0_i32_0 = arith.constant 0 : i32
    %c0_i32_1 = arith.constant 0 : i32
    return %arg0, %c0_i32, %c0_i32_0 : i32, i32, i32
  }
  func.func @transform_5(%arg0: i32, %arg1: i32) -> (i32, i32, i32) {
    %c0_i32 = arith.constant 0 : i32
    %c0_i32_0 = arith.constant 0 : i32
    return %arg0, %arg1, %c0_i32 : i32, i32, i32
  }
}

module attributes {stable_mosaic.version = 11 : i64} {
  func.func @_proj_kernel(%arg0: i32, %arg1: i32, %arg2: memref<1x64x128xbf16, #tpu.memory_space<vmem>>, %arg3: memref<1x128x128xbf16, #tpu.memory_space<vmem>>, %arg4: memref<1x1x128xf32, #tpu.memory_space<vmem>>, %arg5: memref<1x128x128xbf16, #tpu.memory_space<vmem>>, %arg6: memref<1x3x128xf32, #tpu.memory_space<vmem>>, %arg7: memref<1x64x128xf32, #tpu.memory_space<vmem>>) attributes {dimension_semantics = [#tpu.dimension_semantics<parallel>, #tpu.dimension_semantics<parallel>], iteration_bounds = array<i64: 2, 1>, scalar_prefetch = 0 : i64, scratch_operands = 0 : i64, tpu.core_type = #tpu.core_type<tc>, window_params = [{transform_indices = @transform_0, window_bounds = array<i64: 1, 64, 128>}, {transform_indices = @transform_1, window_bounds = array<i64: 1, 128, 128>}, {transform_indices = @transform_2, window_bounds = array<i64: 1, 1, 128>}, {transform_indices = @transform_3, window_bounds = array<i64: 1, 128, 128>}, {transform_indices = @transform_4, window_bounds = array<i64: 1, 3, 128>}, {transform_indices = @transform_5, window_bounds = array<i64: 1, 64, 128>}]} {
    %c0 = arith.constant 0 : index
    %c0_0 = arith.constant 0 : index
    %c0_1 = arith.constant 0 : index
    %0 = vector.load %arg2[%c0, %c0_0, %c0_1] : memref<1x64x128xbf16, #tpu.memory_space<vmem>>, vector<1x64x128xbf16>
    %1 = vector.shape_cast %0 : vector<1x64x128xbf16> to vector<64x128xbf16>
    %c0_2 = arith.constant 0 : index
    %c0_3 = arith.constant 0 : index
    %c0_4 = arith.constant 0 : index
    %2 = vector.load %arg3[%c0_2, %c0_3, %c0_4] : memref<1x128x128xbf16, #tpu.memory_space<vmem>>, vector<1x128x128xbf16>
    %3 = vector.shape_cast %2 : vector<1x128x128xbf16> to vector<128x128xbf16>
    %cst = arith.constant dense<0.000000e+00> : vector<64x128xf32>
    %4 = tpu.matmul %1, %3, %cst {dimension_numbers = #tpu.dot_dimension_numbers<[1], [0], [0], [1], [0, 0, 1, 1], [], []>} : vector<64x128xbf16>, vector<128x128xbf16>, vector<64x128xf32> -> vector<64x128xf32>
    %c0_5 = arith.constant 0 : index
    %c0_6 = arith.constant 0 : index
    %c0_7 = arith.constant 0 : index
    %5 = vector.load %arg4[%c0_5, %c0_6, %c0_7] : memref<1x1x128xf32, #tpu.memory_space<vmem>>, vector<1x1x128xf32>
    %6 = vector.shape_cast %5 : vector<1x1x128xf32> to vector<1x128xf32>
    %7 = vector.broadcast %6 : vector<1x128xf32> to vector<64x128xf32>
    %8 = arith.addf %4, %7 : vector<64x128xf32>
    %9 = arith.mulf %8, %8 : vector<64x128xf32>
    %10 = arith.mulf %8, %9 : vector<64x128xf32>
    %cst_8 = arith.constant 4.471500e-02 : f32
    %11 = vector.broadcast %cst_8 : f32 to vector<64x128xf32>
    %12 = arith.mulf %11, %10 : vector<64x128xf32>
    %13 = arith.addf %8, %12 : vector<64x128xf32>
    %cst_9 = arith.constant 0.797884583 : f32
    %14 = vector.broadcast %cst_9 : f32 to vector<64x128xf32>
    %15 = arith.mulf %14, %13 : vector<64x128xf32>
    %16 = math.tanh %15 : vector<64x128xf32>
    %cst_10 = arith.constant 1.000000e+00 : f32
    %17 = vector.broadcast %cst_10 : f32 to vector<64x128xf32>
    %18 = arith.addf %17, %16 : vector<64x128xf32>
    %cst_11 = arith.constant 5.000000e-01 : f32
    %19 = vector.broadcast %cst_11 : f32 to vector<64x128xf32>
    %20 = arith.mulf %19, %18 : vector<64x128xf32>
    %21 = arith.mulf %8, %20 : vector<64x128xf32>
    %22 = arith.truncf %21 : vector<64x128xf32> to vector<64x128xbf16>
    %c0_12 = arith.constant 0 : index
    %c0_13 = arith.constant 0 : index
    %c0_14 = arith.constant 0 : index
    %23 = vector.load %arg5[%c0_12, %c0_13, %c0_14] : memref<1x128x128xbf16, #tpu.memory_space<vmem>>, vector<1x128x128xbf16>
    %24 = vector.shape_cast %23 : vector<1x128x128xbf16> to vector<128x128xbf16>
    %cst_15 = arith.constant dense<0.000000e+00> : vector<64x128xf32>
    %25 = tpu.matmul %22, %24, %cst_15 {dimension_numbers = #tpu.dot_dimension_numbers<[1], [0], [0], [1], [0, 0, 1, 1], [], []>} : vector<64x128xbf16>, vector<128x128xbf16>, vector<64x128xf32> -> vector<64x128xf32>
    %c0_16 = arith.constant 0 : index
    %c0_17 = arith.constant 0 : index
    %c0_18 = arith.constant 0 : index
    %26 = vector.load %arg6[%c0_16, %c0_17, %c0_18] : memref<1x3x128xf32, #tpu.memory_space<vmem>>, vector<1x1x128xf32>
    %27 = vector.shape_cast %26 : vector<1x1x128xf32> to vector<1x128xf32>
    %c0_19 = arith.constant 0 : index
    %c1 = arith.constant 1 : index
    %c0_20 = arith.constant 0 : index
    %28 = vector.load %arg6[%c0_19, %c1, %c0_20] : memref<1x3x128xf32, #tpu.memory_space<vmem>>, vector<1x1x128xf32>
    %29 = vector.shape_cast %28 : vector<1x1x128xf32> to vector<1x128xf32>
    %c0_21 = arith.constant 0 : index
    %c2 = arith.constant 2 : index
    %c0_22 = arith.constant 0 : index
    %30 = vector.load %arg6[%c0_21, %c2, %c0_22] : memref<1x3x128xf32, #tpu.memory_space<vmem>>, vector<1x1x128xf32>
    %31 = vector.shape_cast %30 : vector<1x1x128xf32> to vector<1x128xf32>
    %32 = vector.broadcast %27 : vector<1x128xf32> to vector<64x128xf32>
    %33 = arith.addf %25, %32 : vector<64x128xf32>
    %cst_23 = arith.constant dense<0.000000e+00> : vector<64xf32>
    %34 = vector.multi_reduction <add>, %33, %cst_23 [1] : vector<64x128xf32> to vector<64xf32>
    %35 = vector.shape_cast %34 : vector<64xf32> to vector<64x1xf32>
    %cst_24 = arith.constant 1.562500e-02 : f32
    %36 = vector.broadcast %cst_24 : f32 to vector<64x1xf32>
    %37 = arith.mulf %35, %36 : vector<64x1xf32>
    %38 = vector.broadcast %37 : vector<64x1xf32> to vector<64x128xf32>
    %39 = arith.subf %33, %38 : vector<64x128xf32>
    %40 = arith.mulf %39, %39 : vector<64x128xf32>
    %cst_25 = arith.constant dense<0.000000e+00> : vector<64xf32>
    %41 = vector.multi_reduction <add>, %40, %cst_25 [1] : vector<64x128xf32> to vector<64xf32>
    %42 = vector.shape_cast %41 : vector<64xf32> to vector<64x1xf32>
    %43 = arith.mulf %37, %37 : vector<64x1xf32>
    %cst_26 = arith.constant 6.400000e+01 : f32
    %44 = vector.broadcast %cst_26 : f32 to vector<64x1xf32>
    %45 = arith.mulf %44, %43 : vector<64x1xf32>
    %46 = arith.subf %42, %45 : vector<64x1xf32>
    %cst_27 = arith.constant 1.562500e-02 : f32
    %47 = vector.broadcast %cst_27 : f32 to vector<64x1xf32>
    %48 = arith.mulf %46, %47 : vector<64x1xf32>
    %cst_28 = arith.constant 9.99999974E-6 : f32
    %49 = vector.broadcast %cst_28 : f32 to vector<64x1xf32>
    %50 = arith.addf %48, %49 : vector<64x1xf32>
    %51 = math.rsqrt %50 : vector<64x1xf32>
    %52 = vector.broadcast %51 : vector<64x1xf32> to vector<64x128xf32>
    %53 = arith.mulf %39, %52 : vector<64x128xf32>
    %54 = vector.broadcast %29 : vector<1x128xf32> to vector<64x128xf32>
    %55 = arith.mulf %53, %54 : vector<64x128xf32>
    %56 = vector.broadcast %31 : vector<1x128xf32> to vector<64x128xf32>
    %57 = arith.addf %55, %56 : vector<64x128xf32>
    %c0_29 = arith.constant 0 : index
    %c0_30 = arith.constant 0 : index
    %c0_31 = arith.constant 0 : index
    %58 = vector.load %arg7[%c0_29, %c0_30, %c0_31] : memref<1x64x128xf32, #tpu.memory_space<vmem>>, vector<1x64x128xf32>
    %59 = vector.shape_cast %58 : vector<1x64x128xf32> to vector<64x128xf32>
    %60 = vector.shape_cast %57 : vector<64x128xf32> to vector<1x64x128xf32>
    tpu.vector_store %arg7[%c0_29, %c0_30, %c0_31], %60 {strides = array<i32>} : memref<1x64x128xf32, #tpu.memory_space<vmem>>, vector<1x64x128xf32>,
    return
  }
  func.func @transform_0(%arg0: i32, %arg1: i32) -> (i32, i32, i32) {
    %c0_i32 = arith.constant 0 : i32
    %c0_i32_0 = arith.constant 0 : i32
    return %arg0, %arg1, %c0_i32 : i32, i32, i32
  }
  func.func @transform_1(%arg0: i32, %arg1: i32) -> (i32, i32, i32) {
    %c0_i32 = arith.constant 0 : i32
    %c0_i32_0 = arith.constant 0 : i32
    %c0_i32_1 = arith.constant 0 : i32
    return %arg0, %c0_i32, %c0_i32_0 : i32, i32, i32
  }
  func.func @transform_2(%arg0: i32, %arg1: i32) -> (i32, i32, i32) {
    %c0_i32 = arith.constant 0 : i32
    %c0_i32_0 = arith.constant 0 : i32
    %c0_i32_1 = arith.constant 0 : i32
    return %arg0, %c0_i32, %c0_i32_0 : i32, i32, i32
  }
  func.func @transform_3(%arg0: i32, %arg1: i32) -> (i32, i32, i32) {
    %c0_i32 = arith.constant 0 : i32
    %c0_i32_0 = arith.constant 0 : i32
    %c0_i32_1 = arith.constant 0 : i32
    return %arg0, %c0_i32, %c0_i32_0 : i32, i32, i32
  }
  func.func @transform_4(%arg0: i32, %arg1: i32) -> (i32, i32, i32) {
    %c0_i32 = arith.constant 0 : i32
    %c0_i32_0 = arith.constant 0 : i32
    %c0_i32_1 = arith.constant 0 : i32
    return %arg0, %c0_i32, %c0_i32_0 : i32, i32, i32
  }
  func.func @transform_5(%arg0: i32, %arg1: i32) -> (i32, i32, i32) {
    %c0_i32 = arith.constant 0 : i32
    %c0_i32_0 = arith.constant 0 : i32
    return %arg0, %arg1, %c0_i32 : i32, i32, i32
  }
}

</mosaic_0001>

<llo_original>
// kernel: ip_adapter_forward.1
$region0: #{ip_adapter_forward.1}
  #allocation0 [shape = 'u32[]', space=smem, size = 0x4, offset = 0x4, fixed_abs, tag = 'smem constant byte address 0x4 - core index']
  #allocation1 [shape = 'u32[144,128]{1,0:T(1,128)}', space=vmem, size = 0x12000, scoped, tag = 'internal scratch']
  %s0 = inlined_call_operand.vmem [shape: bf16[2,64,128], index: 0, kind: input, shape index: {}]
  %s1 = inlined_call_operand.vmem [shape: bf16[2,128,128], index: 1, kind: input, shape index: {}]
  %s2 = inlined_call_operand.vmem [shape: f32[2,1,128], index: 2, kind: input, shape index: {}]
  %s3 = inlined_call_operand.vmem [shape: bf16[2,128,128], index: 3, kind: input, shape index: {}]
  %s4 = inlined_call_operand.vmem [shape: f32[2,3,128], index: 4, kind: input, shape index: {}]
  %s5 = inlined_call_operand.vmem [shape: f32[2,64,128], index: 5, kind: output, shape index: {}]
  %s6 = sld [smem:[#allocation0]]
  $region53: #{ip_adapter_forward.1} parent=0
    _
  %s8 = ssub.s32 1, %s6
  %s9 = scalar_select 0, %s8, %s6
  loop: start=0, step=1, limit=4
  $region2: #{ip_adapter_forward.1} parent=0 // loop_pre_header
    _
  $region3: #{ip_adapter_forward.1} parent=0 // loop_header
    %s11 = sphi 0, %s15
    %p12 = scmp.ge.s32.totalorder %s11, 4
    %s18 = sphi 0, %s30
    %s19 = sphi 0, %s26
    %s20 = sphi 0, %s18
    %s21 = sphi 0, %s19
    %s22 = sphi 0, %s20
    %s23 = sphi 0, %s21
    %s35 = sphi 0, %s37
    %s38 = sphi 0, %s35
    %s39 = sphi 0, %s38
    %s55 = sphi 0, %s39
    %s61 = sphi 0, %s63
    %s64 = sphi 0, %s61
    %s65 = sphi 0, %s64
    %s81 = sphi 0, %s65
    %s87 = sphi 0, %s89
    %s90 = sphi 0, %s87
    %s91 = sphi 0, %s90
    %s107 = sphi 0, %s91
    %s113 = sphi 0, %s115
    %s116 = sphi 0, %s113
    %s117 = sphi 0, %s116
    %s133 = sphi 0, %s117
    %s139 = sphi 0, %s141
    %s142 = sphi 0, %s139
    %s143 = sphi 0, %s142
    %s159 = sphi 0, %s143
    %s167 = sphi 0, %s169
    %s170 = sphi 0, %s167
    %s171 = sphi 0, %s170
    %s187 = sphi 0, %s171
  $region4: #{ip_adapter_forward.1} parent=0 // loop_header_branch
    %14 = sbr.rel (%p12) target = $region8
  $region5: #{ip_adapter_forward.1} parent=0 // loop_body
    %s16 = ssub.s32 %s11, 1
    %s17 = ssub.s32 %s11, 2
    %s24 = sadd.s32 1, %s19
    %p25 = scmp.ge.s32.totalorder %s24, 1
    %s26 = scalar_select %p25, 0, %s24
    %s27 = sadd.s32 1, %s18
    %s28 = scalar_select %p25, %s27, %s18
    %p29 = scmp.ge.s32.totalorder %s28, 2
    %s30 = scalar_select %p29, 0, %s28
    %s31 = ssub.s32 %s18, %s30
    %s32 = ssub.s32 %s19, %s26
    %s33 = sor.u32 %s31, %s32
    %p34 = scmp.eq.s32.totalorder %s33, 0
    %s36 = sadd.s32 %s35, 1
    %s37 = scalar_select %p34, %s35, %s36
    %p40 = pneg %p34
    %p41 = scmp.eq.s32.totalorder %s11, 1
    %p42 = por %p40, %p41
    %p43 = scmp.ne.s32.totalorder %s35, %s38
    %p44 = scmp.eq.s32.totalorder %s11, 0
    %p45 = por %p43, %p44
    %p46 = scmp.ne.s32.totalorder %s35, %s38
    %p47 = scmp.eq.s32.totalorder %s16, 1
    %p48 = por %p46, %p47
    %p49 = scmp.ne.s32.totalorder %s38, %s39
    %p50 = scmp.eq.s32.totalorder %s16, 0
    %p51 = por %p49, %p50
    %p52 = scmp.ne.s32.totalorder %s38, %s39
    %p53 = scmp.eq.s32.totalorder %s17, 1
    %p54 = por %p52, %p53
    %p56 = scmp.ne.s32.totalorder %s39, %s55
    %p57 = scmp.eq.s32.totalorder %s17, 0
    %p58 = por %p56, %p57
    %s59 = ssub.s32 %s18, %s30
    %p60 = scmp.eq.s32.totalorder %s59, 0
    %s62 = sadd.s32 %s61, 1
    %s63 = scalar_select %p60, %s61, %s62
    %p66 = pneg %p60
    %p67 = scmp.eq.s32.totalorder %s11, 1
    %p68 = por %p66, %p67
    %p69 = scmp.ne.s32.totalorder %s61, %s64
    %p70 = scmp.eq.s32.totalorder %s11, 0
    %p71 = por %p69, %p70
    %p72 = scmp.ne.s32.totalorder %s61, %s64
    %p73 = scmp.eq.s32.totalorder %s16, 1
    %p74 = por %p72, %p73
    %p75 = scmp.ne.s32.totalorder %s64, %s65
    %p76 = scmp.eq.s32.totalorder %s16, 0
    %p77 = por %p75, %p76
    %p78 = scmp.ne.s32.totalorder %s64, %s65
    %p79 = scmp.eq.s32.totalorder %s17, 1
    %p80 = por %p78, %p79
    %p82 = scmp.ne.s32.totalorder %s65, %s81
    %p83 = scmp.eq.s32.totalorder %s17, 0
    %p84 = por %p82, %p83
    %s85 = ssub.s32 %s18, %s30
    %p86 = scmp.eq.s32.totalorder %s85, 0
    %s88 = sadd.s32 %s87, 1
    %s89 = scalar_select %p86, %s87, %s88
    %p92 = pneg %p86
    %p93 = scmp.eq.s32.totalorder %s11, 1
    %p94 = por %p92, %p93
    %p95 = scmp.ne.s32.totalorder %s87, %s90
    %p96 = scmp.eq.s32.totalorder %s11, 0
    %p97 = por %p95, %p96
    %p98 = scmp.ne.s32.totalorder %s87, %s90
    %p99 = scmp.eq.s32.totalorder %s16, 1
    %p100 = por %p98, %p99
    %p101 = scmp.ne.s32.totalorder %s90, %s91
    %p102 = scmp.eq.s32.totalorder %s16, 0
    %p103 = por %p101, %p102
    %p104 = scmp.ne.s32.totalorder %s90, %s91
    %p105 = scmp.eq.s32.totalorder %s17, 1
    %p106 = por %p104, %p105
    %p108 = scmp.ne.s32.totalorder %s91, %s107
    %p109 = scmp.eq.s32.totalorder %s17, 0
    %p110 = por %p108, %p109
    %s111 = ssub.s32 %s18, %s30
    %p112 = scmp.eq.s32.totalorder %s111, 0
    %s114 = sadd.s32 %s113, 1
    %s115 = scalar_select %p112, %s113, %s114
    %p118 = pneg %p112
    %p119 = scmp.eq.s32.totalorder %s11, 1
    %p120 = por %p118, %p119
    %p121 = scmp.ne.s32.totalorder %s113, %s116
    %p122 = scmp.eq.s32.totalorder %s11, 0
    %p123 = por %p121, %p122
    %p124 = scmp.ne.s32.totalorder %s113, %s116
    %p125 = scmp.eq.s32.totalorder %s16, 1
    %p126 = por %p124, %p125
    %p127 = scmp.ne.s32.totalorder %s116, %s117
    %p128 = scmp.eq.s32.totalorder %s16, 0
    %p129 = por %p127, %p128
    %p130 = scmp.ne.s32.totalorder %s116, %s117
    %p131 = scmp.eq.s32.totalorder %s17, 1
    %p132 = por %p130, %p131
    %p134 = scmp.ne.s32.totalorder %s117, %s133
    %p135 = scmp.eq.s32.totalorder %s17, 0
    %p136 = por %p134, %p135
    %s137 = ssub.s32 %s18, %s30
    %p138 = scmp.eq.s32.totalorder %s137, 0
    %s140 = sadd.s32 %s139, 1
    %s141 = scalar_select %p138, %s139, %s140
    %p144 = pneg %p138
    %p145 = scmp.eq.s32.totalorder %s11, 1
    %p146 = por %p144, %p145
    %p147 = scmp.ne.s32.totalorder %s139, %s142
    %p148 = scmp.eq.s32.totalorder %s11, 0
    %p149 = por %p147, %p148
    %p150 = scmp.ne.s32.totalorder %s139, %s142
    %p151 = scmp.eq.s32.totalorder %s16, 1
    %p152 = por %p150, %p151
    %p153 = scmp.ne.s32.totalorder %s142, %s143
    %p154 = scmp.eq.s32.totalorder %s16, 0
    %p155 = por %p153, %p154
    %p156 = scmp.ne.s32.totalorder %s142, %s143
    %p157 = scmp.eq.s32.totalorder %s17, 1
    %p158 = por %p156, %p157
    %p160 = scmp.ne.s32.totalorder %s143, %s159
    %p161 = scmp.eq.s32.totalorder %s17, 0
    %p162 = por %p160, %p161
    %s163 = ssub.s32 %s18, %s30
    %s164 = ssub.s32 %s19, %s26
    %s165 = sor.u32 %s163, %s164
    %p166 = scmp.eq.s32.totalorder %s165, 0
    %s168 = sadd.s32 %s167, 1
    %s169 = scalar_select %p166, %s167, %s168
    %p172 = pneg %p166
    %p173 = scmp.eq.s32.totalorder %s11, 1
    %p174 = por %p172, %p173
    %p175 = scmp.ne.s32.totalorder %s167, %s170
    %p176 = scmp.eq.s32.totalorder %s11, 0
    %p177 = por %p175, %p176
    %p178 = scmp.ne.s32.totalorder %s167, %s170
    %p179 = scmp.eq.s32.totalorder %s16, 1
    %p180 = por %p178, %p179
    %p181 = scmp.ne.s32.totalorder %s170, %s171
    %p182 = scmp.eq.s32.totalorder %s16, 0
    %p183 = por %p181, %p182
    %p184 = scmp.ne.s32.totalorder %s170, %s171
    %p185 = scmp.eq.s32.totalorder %s17, 1
    %p186 = por %p184, %p185
    %p188 = scmp.ne.s32.totalorder %s171, %s187
    %p189 = scmp.eq.s32.totalorder %s17, 0
    %p190 = por %p188, %p189
    %p191 = scmp.le.s32.totalorder 1, %s11
    %p192 = scmp.lt.s32.totalorder %s11, 3
    %p193 = pnand %p191, %p192
    %p194 = pneg %p193
    // Predicated region
    $region9: #{ip_adapter_forward.1} parent=5 // pred_check
      _
    $region10: #{ip_adapter_forward.1} parent=5 // pred_check_branch
      %196 = sbr.rel (%p193) target = $region12
    $region11: #{ip_adapter_forward.1} parent=5 // pred_region
      %s197 = ssub.s32 %s11, 1
      // Predicated region
      $region13: #{ip_adapter_forward.1} parent=11 // pred_check
        %p198 = pneg %p77
      $region14: #{ip_adapter_forward.1} parent=11 // pred_check_branch
        %200 = sbr.rel (%p198) target = $region16
      $region15: #{ip_adapter_forward.1} parent=11 // pred_region
        %p201 = scmp.lt.s32.totalorder %s20, 1
        %s202 = scalar_select %p201, %s20, 1
        %s203 = smul.addr %s202, 16
        %s204 = smul.addr %s203, 4
        %s205 = scalar_lea.vmem %s1, %s204
      $region16: #{ip_adapter_forward.1} parent=11 // pred_fallthru
        _
      // Predicated region
      $region17: #{ip_adapter_forward.1} parent=11 // pred_check
        %p206 = pneg %p103
      $region18: #{ip_adapter_forward.1} parent=11 // pred_check_branch
        %208 = sbr.rel (%p206) target = $region20
      $region19: #{ip_adapter_forward.1} parent=11 // pred_region
        %p209 = scmp.lt.s32.totalorder %s20, 1
        %s210 = scalar_select %p209, %s20, 1
        %s211 = scalar_lea.vmem %s2, %s210
      $region20: #{ip_adapter_forward.1} parent=11 // pred_fallthru
        _
      // Predicated region
      $region21: #{ip_adapter_forward.1} parent=11 // pred_check
        %p212 = pneg %p129
      $region22: #{ip_adapter_forward.1} parent=11 // pred_check_branch
        %214 = sbr.rel (%p212) target = $region24
      $region23: #{ip_adapter_forward.1} parent=11 // pred_region
        %p215 = scmp.lt.s32.totalorder %s20, 1
        %s216 = scalar_select %p215, %s20, 1
        %s217 = smul.addr %s216, 16
        %s218 = smul.addr %s217, 4
        %s219 = scalar_lea.vmem %s3, %s218
      $region24: #{ip_adapter_forward.1} parent=11 // pred_fallthru
        _
      // Predicated region
      $region25: #{ip_adapter_forward.1} parent=11 // pred_check
        %p220 = pneg %p155
      $region26: #{ip_adapter_forward.1} parent=11 // pred_check_branch
        %222 = sbr.rel (%p220) target = $region28
      $region27: #{ip_adapter_forward.1} parent=11 // pred_region
        %p223 = scmp.lt.s32.totalorder %s20, 1
        %s224 = scalar_select %p223, %s20, 1
        %s225 = smul.addr %s224, 4
        %s226 = scalar_lea.vmem %s4, %s225
      $region28: #{ip_adapter_forward.1} parent=11 // pred_fallthru
        _
    $region12: #{ip_adapter_forward.1} parent=5 // pred_fallthru
      _
    %p227 = scmp.lt.s32.totalorder %s11, 2
    // Predicated region
    $region29: #{ip_adapter_forward.1} parent=5 // pred_check
      %p228 = pneg %p227
    $region30: #{ip_adapter_forward.1} parent=5 // pred_check_branch
      %230 = sbr.rel (%p228) target = $region32
    $region31: #{ip_adapter_forward.1} parent=5 // pred_region
      // Predicated region
      $region33: #{ip_adapter_forward.1} parent=31 // pred_check
        %p231 = pneg %p45
      $region34: #{ip_adapter_forward.1} parent=31 // pred_check_branch
        %233 = sbr.rel (%p231) target = $region36
      $region35: #{ip_adapter_forward.1} parent=31 // pred_region
        %s234 = smul.u32 8, %s19
        %p235 = scmp.lt.s32.totalorder %s18, 1
        %s236 = scalar_select %p235, %s18, 1
        %p237 = scmp.lt.s32.totalorder %s234, 7
        %s238 = scalar_select %p237, %s234, 7
        %s239 = smul.addr %s236, 8
        %s240 = sadd.s32 %s238, %s239
        %s241 = smul.addr %s240, 4
        %s242 = scalar_lea.vmem %s0, %s241
        %s243 = smul.u32 8, %s19
      $region36: #{ip_adapter_forward.1} parent=31 // pred_fallthru
        _
    $region32: #{ip_adapter_forward.1} parent=5 // pred_fallthru
      _
    %p244 = scmp.le.s32.totalorder 1, %s11
    %p245 = scmp.lt.s32.totalorder %s11, 3
    %p246 = pnand %p244, %p245
    %p247 = pneg %p246
    // Predicated region
    $region37: #{ip_adapter_forward.1} parent=5 // pred_check
      _
    $region38: #{ip_adapter_forward.1} parent=5 // pred_check_branch
      %249 = sbr.rel (%p246) target = $region40
    $region39: #{ip_adapter_forward.1} parent=5 // pred_region
      %s250 = ssub.s32 %s11, 1
      %s251 = smul.u32 8, %s21
      %p252 = scmp.lt.s32.totalorder %s20, 1
      %s253 = scalar_select %p252, %s20, 1
      %p254 = scmp.lt.s32.totalorder %s251, 7
      %s255 = scalar_select %p254, %s251, 7
      %s256 = smul.addr %s253, 8
      %s257 = sadd.s32 %s255, %s256
      %s258 = smul.addr %s257, 4
      %s259 = scalar_lea.vmem %s0, %s258
      %p260 = pneg %p51
      %p261 = pneg %p48
      %p262 = scmp.lt.s32.totalorder %s20, 1
      %s263 = scalar_select %p262, %s20, 1
      %s264 = smul.addr %s263, 16
      %s265 = smul.addr %s264, 4
      %s266 = scalar_lea.vmem %s1, %s265
      %p267 = pneg %p77
      %p268 = pneg %p74
      %p269 = scmp.lt.s32.totalorder %s20, 1
      %s270 = scalar_select %p269, %s20, 1
      %s271 = scalar_lea.vmem %s2, %s270
      %p272 = pneg %p103
      %p273 = pneg %p100
      %p274 = scmp.lt.s32.totalorder %s20, 1
      %s275 = scalar_select %p274, %s20, 1
      %s276 = smul.addr %s275, 16
      %s277 = smul.addr %s276, 4
      %s278 = scalar_lea.vmem %s3, %s277
      %p279 = pneg %p129
      %p280 = pneg %p126
      %p281 = scmp.lt.s32.totalorder %s20, 1
      %s282 = scalar_select %p281, %s20, 1
      %s283 = smul.addr %s282, 4
      %s284 = scalar_lea.vmem %s4, %s283
      %p285 = pneg %p155
      %p286 = pneg %p152
      %p287 = pneg %p183
      %p288 = pneg %p180
      %s289 = smul.u32 8, %s21
      %p290 = scmp.lt.s32.totalorder %s20, 1
      %s291 = scalar_select %p290, %s20, 1
      %p292 = scmp.lt.s32.totalorder %s289, 7
      %s293 = scalar_select %p292, %s289, 7
      %s294 = smul.addr %s291, 8
      %s295 = sadd.s32 %s293, %s294
      %s296 = smul.addr %s295, 8
      %s297 = scalar_lea.vmem %s5, %s296
      %s298 = smul.u32 8, %s21
      %p299 = scmp.lt.s32.totalorder %s20, 1
      %s300 = scalar_select %p299, %s20, 1
      %p301 = scmp.lt.s32.totalorder %s298, 7
      %s302 = scalar_select %p301, %s298, 7
      %s303 = smul.addr %s300, 8
      %s304 = sadd.s32 %s302, %s303
      %s305 = smul.addr %s304, 4
      %s306 = scalar_lea.vmem %s0, %s305
      %s307 = smul.u32 8, %s21
      %p308 = scmp.lt.s32.totalorder %s20, 1
      %s309 = scalar_select %p308, %s20, 1
      %s310 = smul.addr %s309, 16
      %s311 = smul.addr %s310, 4
      %s312 = scalar_lea.vmem %s1, %s311
      %p313 = scmp.lt.s32.totalorder %s20, 1
      %s314 = scalar_select %p313, %s20, 1
      %s315 = scalar_lea.vmem %s2, %s314
      %p316 = scmp.lt.s32.totalorder %s20, 1
      %s317 = scalar_select %p316, %s20, 1
      %s318 = smul.addr %s317, 16
      %s319 = smul.addr %s318, 4
      %s320 = scalar_lea.vmem %s3, %s319
      %p321 = scmp.lt.s32.totalorder %s20, 1
      %s322 = scalar_select %p321, %s20, 1
      %s323 = smul.addr %s322, 4
      %s324 = scalar_lea.vmem %s4, %s323
      %s325 = smul.u32 8, %s21
      %p326 = scmp.lt.s32.totalorder %s20, 1
      %s327 = scalar_select %p326, %s20, 1
      %p328 = scmp.lt.s32.totalorder %s325, 7
      %s329 = scalar_select %p328, %s325, 7
      %s330 = smul.addr %s327, 8
      %s331 = sadd.s32 %s329, %s330
      %s332 = smul.addr %s331, 8
      %s333 = scalar_lea.vmem %s5, %s332
      %s334 = smul.u32 8, %s21
      %v336 = vld [vmem:[%s306] sm:$0xf]
      %v337 = vld [vmem:[%s306 + $0x4] sm:$0xf]
      %v338 = vld [vmem:[%s306 + $0x8] sm:$0xf]
      %v339 = vld [vmem:[%s306 + $0xc] sm:$0xf]
      %v340 = vld [vmem:[%s306 + $0x10] sm:$0xf]
      %v341 = vld [vmem:[%s306 + $0x14] sm:$0xf]
      %v342 = vld [vmem:[%s306 + $0x18] sm:$0xf]
      %v343 = vld [vmem:[%s306 + $0x1c] sm:$0xf]
      %v344 = vld [vmem:[%s312] sm:$0xf]
      %v345 = vld [vmem:[%s312 + $0x4] sm:$0xf]
      %v346 = vld [vmem:[%s312 + $0x8] sm:$0xf]
      %v347 = vld [vmem:[%s312 + $0xc] sm:$0xf]
      %v348 = vld [vmem:[%s312 + $0x10] sm:$0xf]
      %v349 = vld [vmem:[%s312 + $0x14] sm:$0xf]
      %v350 = vld [vmem:[%s312 + $0x18] sm:$0xf]
      %v351 = vld [vmem:[%s312 + $0x1c] sm:$0xf]
      %v352 = vld [vmem:[%s312 + $0x20] sm:$0xf]
      %v353 = vld [vmem:[%s312 + $0x24] sm:$0xf]
      %v354 = vld [vmem:[%s312 + $0x28] sm:$0xf]
      %v355 = vld [vmem:[%s312 + $0x2c] sm:$0xf]
      %v356 = vld [vmem:[%s312 + $0x30] sm:$0xf]
      %v357 = vld [vmem:[%s312 + $0x34] sm:$0xf]
      %v358 = vld [vmem:[%s312 + $0x38] sm:$0xf]
      %v359 = vld [vmem:[%s312 + $0x3c] sm:$0xf]
      %v360 = vld [vmem:[%s315] sm:$0x1]
      %v362 = vlaneseq
      %v363 = vshrl.u32 %v362, 7
      %v364 = vsub.s32 0, %v363
      %v365 = vrot.slane %v360, %v364
      %v375 = vunpack.c.l.b16 %v336
      %v376 = vunpack.c.l.b16 %v337
      %v377 = vunpack.c.l.b16 %v338
      %v378 = vunpack.c.l.b16 %v339
      %v379 = vunpack.c.l.b16 %v340
      %v380 = vunpack.c.l.b16 %v341
      %v381 = vunpack.c.l.b16 %v342
      %v382 = vunpack.c.l.b16 %v343
      %v383 = vpack.c.b16 %v376, %v375
      %v384 = vpack.c.b16 %v378, %v377
      %v385 = vpack.c.b16 %v380, %v379
      %v386 = vpack.c.b16 %v382, %v381
      %v407 = vunpack.c.l.b16 %v344
      %v408 = vunpack.c.l.b16 %v345
      %v409 = vunpack.c.l.b16 %v346
      %v410 = vunpack.c.l.b16 %v347
      %v411 = vunpack.c.l.b16 %v348
      %v412 = vunpack.c.l.b16 %v349
      %v413 = vunpack.c.l.b16 %v350
      %v414 = vunpack.c.l.b16 %v351
      %v415 = vunpack.c.l.b16 %v352
      %v416 = vunpack.c.l.b16 %v353
      %v417 = vunpack.c.l.b16 %v354
      %v418 = vunpack.c.l.b16 %v355
      %v419 = vunpack.c.l.b16 %v356
      %v420 = vunpack.c.l.b16 %v357
      %v421 = vunpack.c.l.b16 %v358
      %v422 = vunpack.c.l.b16 %v359
      %v423 = vpack.c.b16 %v408, %v407
      %v424 = vpack.c.b16 %v410, %v409
      %v425 = vpack.c.b16 %v412, %v411
      %v426 = vpack.c.b16 %v414, %v413
      %v427 = vpack.c.b16 %v416, %v415
      %v428 = vpack.c.b16 %v418, %v417
      %v429 = vpack.c.b16 %v420, %v419
      %v430 = vpack.c.b16 %v422, %v421
      %439 = vmatprep.subr.bf16.mxu0 0
      %440 = vmatpush1.bf16.msra.mxu0 %v423
      %441 = vmatprep.subr.bf16.mxu0 0
      %442 = vmatpush1.bf16.msra.mxu0 %v424
      %443 = vmatprep.subr.bf16.mxu0 0
      %444 = vmatpush1.bf16.msra.mxu0 %v425
      %445 = vmatprep.subr.bf16.mxu0 0
      %446 = vmatpush1.bf16.msra.mxu0 %v426
      %447 = vmatprep.subr.bf16.mxu0 0
      %448 = vmatpush1.bf16.msra.mxu0 %v427
      %449 = vmatprep.subr.bf16.mxu0 0
      %450 = vmatpush1.bf16.msra.mxu0 %v428
      %451 = vmatprep.subr.bf16.mxu0 0
      %452 = vmatpush1.bf16.msra.mxu0 %v429
      %453 = vmatprep.subr.bf16.mxu0 0
      %454 = vmatpush1.bf16.msra.mxu0 %v430
      %455 = vmatprep.subr.bf16.mxu0 0
      %456 = vmatpush1.bf16.msra.mxu0 0
      %457 = vmatprep.subr.bf16.mxu0 0
      %458 = vmatpush1.bf16.msra.mxu0 0
      %459 = vmatprep.subr.bf16.mxu0 0
      %460 = vmatpush1.bf16.msra.mxu0 0
      %461 = vmatprep.subr.bf16.mxu0 0
      %462 = vmatpush1.bf16.msra.mxu0 0
      %463 = vmatprep.subr.bf16.mxu0 0
      %464 = vmatpush1.bf16.msra.mxu0 0
      %465 = vmatprep.subr.bf16.mxu0 0
      %466 = vmatpush1.bf16.msra.mxu0 0
      %467 = vmatprep.subr.bf16.mxu0 0
      %468 = vmatpush1.bf16.msra.mxu0 0
      %469 = vmatprep.subr.bf16.mxu0 0
      %470 = vmatpush1.bf16.msra.mxu0 0
      %471 = vmatprep.mubr.bf16.mxu0 0
      %472 = vmatmul.mubr.bf16.gmra.mrb[0].mxu0 %v383
      %v473 = vpop.f32.mrb[0].mxu0
      %v474 = vadd.f32 %v365, %v473
      %v475 = vpop.f32.mrb[0].mxu0
      %v476 = vpop.f32.mrb[0].mxu0
      %v477 = vadd.f32 %v365, %v476
      %v478 = vpop.f32.mrb[0].mxu0
      %479 = vmatprep.mubr.bf16.mxu0 0
      %480 = vmatmul.mubr.bf16.gmra.mrb[0].mxu0 %v384
      %v481 = vpop.f32.mrb[0].mxu0
      %v482 = vadd.f32 %v365, %v481
      %v483 = vpop.f32.mrb[0].mxu0
      %v484 = vpop.f32.mrb[0].mxu0
      %v485 = vadd.f32 %v365, %v484
      %v486 = vpop.f32.mrb[0].mxu0
      %487 = vmatprep.mubr.bf16.mxu0 0
      %488 = vmatmul.mubr.bf16.gmra.mrb[0].mxu0 %v385
      %v489 = vpop.f32.mrb[0].mxu0
      %v490 = vadd.f32 %v365, %v489
      %v491 = vpop.f32.mrb[0].mxu0
      %v492 = vpop.f32.mrb[0].mxu0
      %v493 = vadd.f32 %v365, %v492
      %v494 = vpop.f32.mrb[0].mxu0
      %495 = vmatprep.mubr.bf16.mxu0 0
      %496 = vmatmul.mubr.bf16.gmra.mrb[0].mxu0 %v386
      %v497 = vpop.f32.mrb[0].mxu0
      %v498 = vadd.f32 %v365, %v497
      %v499 = vpop.f32.mrb[0].mxu0
      %v500 = vpop.f32.mrb[0].mxu0
      %v501 = vadd.f32 %v365, %v500
      %v502 = vpop.f32.mrb[0].mxu0
      %503 = vdwg.mxu0
      %v504 = vmul.f32 %v474, %v474
      %v505 = vmul.f32 %v477, %v477
      %v506 = vmul.f32 %v482, %v482
      %v507 = vmul.f32 %v485, %v485
      %v508 = vmul.f32 %v490, %v490
      %v509 = vmul.f32 %v493, %v493
      %v510 = vmul.f32 %v498, %v498
      %v511 = vmul.f32 %v501, %v501
      %v512 = vmul.f32 %v474, %v504
      %v513 = vmul.f32 %v477, %v505
      %v514 = vmul.f32 %v482, %v506
      %v515 = vmul.f32 %v485, %v507
      %v516 = vmul.f32 %v490, %v508
      %v517 = vmul.f32 %v493, %v509
      %v518 = vmul.f32 %v498, %v510
      %v519 = vmul.f32 %v501, %v511
      %v520 = vmul.f32 %v512, 0.044715
      %v521 = vmul.f32 %v513, 0.044715
      %v522 = vmul.f32 %v514, 0.044715
      %v523 = vmul.f32 %v515, 0.044715
      %v524 = vmul.f32 %v516, 0.044715
      %v525 = vmul.f32 %v517, 0.044715
      %v526 = vmul.f32 %v518, 0.044715
      %v527 = vmul.f32 %v519, 0.044715
      %v528 = vadd.f32 %v474, %v520
      %v529 = vadd.f32 %v477, %v521
      %v530 = vadd.f32 %v482, %v522
      %v531 = vadd.f32 %v485, %v523
      %v532 = vadd.f32 %v490, %v524
      %v533 = vadd.f32 %v493, %v525
      %v534 = vadd.f32 %v498, %v526
      %v535 = vadd.f32 %v501, %v527
      %v536 = vmul.f32 %v528, 0.7978846
      %v537 = vmul.f32 %v529, 0.7978846
      %v538 = vmul.f32 %v530, 0.7978846
      %v539 = vmul.f32 %v531, 0.7978846
      %v540 = vmul.f32 %v532, 0.7978846
      %v541 = vmul.f32 %v533, 0.7978846
      %v542 = vmul.f32 %v534, 0.7978846
      %v543 = vmul.f32 %v535, 0.7978846
      %v544 = vtanh.pop %v536
      %v545 = vtanh.pop %v537
      %v546 = vtanh.pop %v538
      %v547 = vtanh.pop %v539
      %v548 = vtanh.pop %v540
      %v549 = vtanh.pop %v541
      %v550 = vtanh.pop %v542
      %v551 = vtanh.pop %v543
      %v552 = vadd.f32 %v544, 1.0
      %v553 = vadd.f32 %v545, 1.0
      %v554 = vadd.f32 %v546, 1.0
      %v555 = vadd.f32 %v547, 1.0
      %v556 = vadd.f32 %v548, 1.0
      %v557 = vadd.f32 %v549, 1.0
      %v558 = vadd.f32 %v550, 1.0
      %v559 = vadd.f32 %v551, 1.0
      %v560 = vmul.f32 %v552, 0.5
      %v561 = vmul.f32 %v553, 0.5
      %v562 = vmul.f32 %v554, 0.5
      %v563 = vmul.f32 %v555, 0.5
      %v564 = vmul.f32 %v556, 0.5
      %v565 = vmul.f32 %v557, 0.5
      %v566 = vmul.f32 %v558, 0.5
      %v567 = vmul.f32 %v559, 0.5
      %v568 = vmul.f32 %v474, %v560
      %v569 = vmul.f32 %v477, %v561
      %v570 = vmul.f32 %v482, %v562
      %v571 = vmul.f32 %v485, %v563
      %v572 = vmul.f32 %v490, %v564
      %v573 = vmul.f32 %v493, %v565
      %v574 = vmul.f32 %v498, %v566
      %v575 = vmul.f32 %v501, %v567
      %v576 = vpack.c.bf16 %v569, %v568
      %v577 = vpack.c.bf16 %v571, %v570
      %v578 = vpack.c.bf16 %v573, %v572
      %v579 = vpack.c.bf16 %v575, %v574
      %v580 = vld [vmem:[%s320] sm:$0xf]
      %v581 = vld [vmem:[%s320 + $0x4] sm:$0xf]
      %v582 = vld [vmem:[%s320 + $0x8] sm:$0xf]
      %v583 = vld [vmem:[%s320 + $0xc] sm:$0xf]
      %v584 = vld [vmem:[%s320 + $0x10] sm:$0xf]
      %v585 = vld [vmem:[%s320 + $0x14] sm:$0xf]
      %v586 = vld [vmem:[%s320 + $0x18] sm:$0xf]
      %v587 = vld [vmem:[%s320 + $0x1c] sm:$0xf]
      %v588 = vld [vmem:[%s320 + $0x20] sm:$0xf]
      %v589 = vld [vmem:[%s320 + $0x24] sm:$0xf]
      %v590 = vld [vmem:[%s320 + $0x28] sm:$0xf]
      %v591 = vld [vmem:[%s320 + $0x2c] sm:$0xf]
      %v592 = vld [vmem:[%s320 + $0x30] sm:$0xf]
      %v593 = vld [vmem:[%s320 + $0x34] sm:$0xf]
      %v594 = vld [vmem:[%s320 + $0x38] sm:$0xf]
      %v595 = vld [vmem:[%s320 + $0x3c] sm:$0xf]
      %v596 = vld [vmem:[%s324] sm:$0x1]
      %v597 = vld [vmem:[%s324 + $0x1] sm:$0x1]
      %v598 = vld [vmem:[%s324 + $0x2] sm:$0x1]
      %v599 = vlaneseq
      %v600 = vshrl.u32 %v599, 7
      %v601 = vsub.s32 0, %v600
      %v602 = vrot.slane %v596, %v601
      %v619 = vunpack.c.l.b16 %v580
      %v620 = vunpack.c.l.b16 %v581
      %v621 = vunpack.c.l.b16 %v582
      %v622 = vunpack.c.l.b16 %v583
      %v623 = vunpack.c.l.b16 %v584
      %v624 = vunpack.c.l.b16 %v585
      %v625 = vunpack.c.l.b16 %v586
      %v626 = vunpack.c.l.b16 %v587
      %v627 = vunpack.c.l.b16 %v588
      %v628 = vunpack.c.l.b16 %v589
      %v629 = vunpack.c.l.b16 %v590
      %v630 = vunpack.c.l.b16 %v591
      %v631 = vunpack.c.l.b16 %v592
      %v632 = vunpack.c.l.b16 %v593
      %v633 = vunpack.c.l.b16 %v594
      %v634 = vunpack.c.l.b16 %v595
      %v635 = vpack.c.b16 %v620, %v619
      %v636 = vpack.c.b16 %v622, %v621
      %v637 = vpack.c.b16 %v624, %v623
      %v638 = vpack.c.b16 %v626, %v625
      %v639 = vpack.c.b16 %v628, %v627
      %v640 = vpack.c.b16 %v630, %v629
      %v641 = vpack.c.b16 %v632, %v631
      %v642 = vpack.c.b16 %v634, %v633
      %651 = vmatprep.subr.bf16.mxu0 0
      %652 = vmatpush1.bf16.msra.mxu0 %v635
      %653 = vmatprep.subr.bf16.mxu0 0
      %654 = vmatpush1.bf16.msra.mxu0 %v636
      %655 = vmatprep.subr.bf16.mxu0 0
      %656 = vmatpush1.bf16.msra.mxu0 %v637
      %657 = vmatprep.subr.bf16.mxu0 0
      %658 = vmatpush1.bf16.msra.mxu0 %v638
      %659 = vmatprep.subr.bf16.mxu0 0
      %660 = vmatpush1.bf16.msra.mxu0 %v639
      %661 = vmatprep.subr.bf16.mxu0 0
      %662 = vmatpush1.bf16.msra.mxu0 %v640
      %663 = vmatprep.subr.bf16.mxu0 0
      %664 = vmatpush1.bf16.msra.mxu0 %v641
      %665 = vmatprep.subr.bf16.mxu0 0
      %666 = vmatpush1.bf16.msra.mxu0 %v642
      %667 = vmatprep.subr.bf16.mxu0 0
      %668 = vmatpush1.bf16.msra.mxu0 0
      %669 = vmatprep.subr.bf16.mxu0 0
      %670 = vmatpush1.bf16.msra.mxu0 0
      %671 = vmatprep.subr.bf16.mxu0 0
      %672 = vmatpush1.bf16.msra.mxu0 0
      %673 = vmatprep.subr.bf16.mxu0 0
      %674 = vmatpush1.bf16.msra.mxu0 0
      %675 = vmatprep.subr.bf16.mxu0 0
      %676 = vmatpush1.bf16.msra.mxu0 0
      %677 = vmatprep.subr.bf16.mxu0 0
      %678 = vmatpush1.bf16.msra.mxu0 0
      %679 = vmatprep.subr.bf16.mxu0 0
      %680 = vmatpush1.bf16.msra.mxu0 0
      %681 = vmatprep.subr.bf16.mxu0 0
      %682 = vmatpush1.bf16.msra.mxu0 0
      %683 = vmatprep.mubr.bf16.mxu0 0
      %684 = vmatmul.mubr.bf16.gmra.mrb[0].mxu0 %v576
      %v685 = vpop.f32.mrb[0].mxu0
      %v686 = vadd.f32 %v602, %v685
      %v687 = vpop.f32.mrb[0].mxu0
      %v688 = vpop.f32.mrb[0].mxu0
      %v689 = vadd.f32 %v602, %v688
      %v690 = vpop.f32.mrb[0].mxu0
      %691 = vmatprep.mubr.bf16.mxu0 0
      %692 = vmatmul.mubr.bf16.gmra.mrb[0].mxu0 %v577
      %v693 = vpop.f32.mrb[0].mxu0
      %v694 = vadd.f32 %v602, %v693
      %v695 = vpop.f32.mrb[0].mxu0
      %v696 = vpop.f32.mrb[0].mxu0
      %v697 = vadd.f32 %v602, %v696
      %v698 = vpop.f32.mrb[0].mxu0
      %699 = vmatprep.mubr.bf16.mxu0 0
      %700 = vmatmul.mubr.bf16.gmra.mrb[0].mxu0 %v578
      %v701 = vpop.f32.mrb[0].mxu0
      %v702 = vadd.f32 %v602, %v701
      %v703 = vpop.f32.mrb[0].mxu0
      %v704 = vpop.f32.mrb[0].mxu0
      %v705 = vadd.f32 %v602, %v704
      %v706 = vpop.f32.mrb[0].mxu0
      %707 = vmatprep.mubr.bf16.mxu0 0
      %708 = vmatmul.mubr.bf16.gmra.mrb[0].mxu0 %v579
      %v709 = vpop.f32.mrb[0].mxu0
      %v710 = vadd.f32 %v602, %v709
      %v711 = vpop.f32.mrb[0].mxu0
      %v712 = vpop.f32.mrb[0].mxu0
      %v713 = vadd.f32 %v602, %v712
      %v714 = vpop.f32.mrb[0].mxu0
      %715 = vdwg.mxu0
      %716 = vadd.xlane.f32.xlu0 %v686
      %v717 = vpop.xlane.xlu0 %716
      %718 = vadd.xlane.f32.xlu0 %v689
      %v719 = vpop.xlane.xlu0 %718
      %720 = vadd.xlane.f32.xlu0 %v694
      %v721 = vpop.xlane.xlu0 %720
      %722 = vadd.xlane.f32.xlu0 %v697
      %v723 = vpop.xlane.xlu0 %722
      %724 = vadd.xlane.f32.xlu0 %v702
      %v725 = vpop.xlane.xlu0 %724
      %726 = vadd.xlane.f32.xlu0 %v705
      %v727 = vpop.xlane.xlu0 %726
      %728 = vadd.xlane.f32.xlu0 %v710
      %v729 = vpop.xlane.xlu0 %728
      %730 = vadd.xlane.f32.xlu0 %v713
      %v731 = vpop.xlane.xlu0 %730
      %v732 = vmul.f32 %v717, 0.015625
      %v733 = vmul.f32 %v719, 0.015625
      %v734 = vmul.f32 %v721, 0.015625
      %v735 = vmul.f32 %v723, 0.015625
      %v736 = vmul.f32 %v725, 0.015625
      %v737 = vmul.f32 %v727, 0.015625
      %v738 = vmul.f32 %v729, 0.015625
      %v739 = vmul.f32 %v731, 0.015625
      %v740 = vsub.f32 %v686, %v732
      %v741 = vsub.f32 %v689, %v733
      %v742 = vsub.f32 %v694, %v734
      %v743 = vsub.f32 %v697, %v735
      %v744 = vsub.f32 %v702, %v736
      %v745 = vsub.f32 %v705, %v737
      %v746 = vsub.f32 %v710, %v738
      %v747 = vsub.f32 %v713, %v739
      %v748 = vmul.f32 %v740, %v740
      %v749 = vmul.f32 %v741, %v741
      %v750 = vmul.f32 %v742, %v742
      %v751 = vmul.f32 %v743, %v743
      %v752 = vmul.f32 %v744, %v744
      %v753 = vmul.f32 %v745, %v745
      %v754 = vmul.f32 %v746, %v746
      %v755 = vmul.f32 %v747, %v747
      %756 = vadd.xlane.f32.xlu0 %v748
      %v757 = vpop.xlane.xlu0 %756
      %758 = vadd.xlane.f32.xlu0 %v749
      %v759 = vpop.xlane.xlu0 %758
      %760 = vadd.xlane.f32.xlu0 %v750
      %v761 = vpop.xlane.xlu0 %760
      %762 = vadd.xlane.f32.xlu0 %v751
      %v763 = vpop.xlane.xlu0 %762
      %764 = vadd.xlane.f32.xlu0 %v752
      %v765 = vpop.xlane.xlu0 %764
      %766 = vadd.xlane.f32.xlu0 %v753
      %v767 = vpop.xlane.xlu0 %766
      %768 = vadd.xlane.f32.xlu0 %v754
      %v769 = vpop.xlane.xlu0 %768
      %770 = vadd.xlane.f32.xlu0 %v755
      %v771 = vpop.xlane.xlu0 %770
      %v772 = vmul.f32 %v732, %v732
      %v773 = vmul.f32 %v733, %v733
      %v774 = vmul.f32 %v734, %v734
      %v775 = vmul.f32 %v735, %v735
      %v776 = vmul.f32 %v736, %v736
      %v777 = vmul.f32 %v737, %v737
      %v778 = vmul.f32 %v738, %v738
      %v779 = vmul.f32 %v739, %v739
      %v780 = vmul.f32 %v772, 64.0
      %v781 = vmul.f32 %v773, 64.0
      %v782 = vmul.f32 %v774, 64.0
      %v783 = vmul.f32 %v775, 64.0
      %v784 = vmul.f32 %v776, 64.0
      %v785 = vmul.f32 %v777, 64.0
      %v786 = vmul.f32 %v778, 64.0
      %v787 = vmul.f32 %v779, 64.0
      %v788 = vsub.f32 %v757, %v780
      %v789 = vsub.f32 %v759, %v781
      %v790 = vsub.f32 %v761, %v782
      %v791 = vsub.f32 %v763, %v783
      %v792 = vsub.f32 %v765, %v784
      %v793 = vsub.f32 %v767, %v785
      %v794 = vsub.f32 %v769, %v786
      %v795 = vsub.f32 %v771, %v787
      %v796 = vmul.f32 %v788, 0.015625
      %v797 = vmul.f32 %v789, 0.015625
      %v798 = vmul.f32 %v790, 0.015625
      %v799 = vmul.f32 %v791, 0.015625
      %v800 = vmul.f32 %v792, 0.015625
      %v801 = vmul.f32 %v793, 0.015625
      %v802 = vmul.f32 %v794, 0.015625
      %v803 = vmul.f32 %v795, 0.015625
      %v804 = vadd.f32 %v796, 1e-05
      %v805 = vadd.f32 %v797, 1e-05
      %v806 = vadd.f32 %v798, 1e-05
      %v807 = vadd.f32 %v799, 1e-05
      %v808 = vadd.f32 %v800, 1e-05
      %v809 = vadd.f32 %v801, 1e-05
      %v810 = vadd.f32 %v802, 1e-05
      %v811 = vadd.f32 %v803, 1e-05
      %v812 = vrsqrt.pop %v804
      %v813 = vrsqrt.pop %v805
      %v814 = vrsqrt.pop %v806
      %v815 = vrsqrt.pop %v807
      %v816 = vrsqrt.pop %v808
      %v817 = vrsqrt.pop %v809
      %v818 = vrsqrt.pop %v810
      %v819 = vrsqrt.pop %v811
      %v820 = vmul.f32 %v740, %v812
      %v821 = vmul.f32 %v741, %v813
      %v822 = vmul.f32 %v742, %v814
      %v823 = vmul.f32 %v743, %v815
      %v824 = vmul.f32 %v744, %v816
      %v825 = vmul.f32 %v745, %v817
      %v826 = vmul.f32 %v746, %v818
      %v827 = vmul.f32 %v747, %v819
      %v828 = vlaneseq
      %v829 = vshrl.u32 %v828, 7
      %v830 = vsub.s32 0, %v829
      %v831 = vrot.slane %v597, %v830
      %v832 = vmul.f32 %v820, %v831
      %v833 = vmul.f32 %v821, %v831
      %v834 = vmul.f32 %v822, %v831
      %v835 = vmul.f32 %v823, %v831
      %v836 = vmul.f32 %v824, %v831
      %v837 = vmul.f32 %v825, %v831
      %v838 = vmul.f32 %v826, %v831
      %v839 = vmul.f32 %v827, %v831
      %v840 = vlaneseq
      %v841 = vshrl.u32 %v840, 7
      %v842 = vsub.s32 0, %v841
      %v843 = vrot.slane %v598, %v842
      %v844 = vadd.f32 %v832, %v843
      %v845 = vadd.f32 %v833, %v843
      %v846 = vadd.f32 %v834, %v843
      %v847 = vadd.f32 %v835, %v843
      %v848 = vadd.f32 %v836, %v843
      %v849 = vadd.f32 %v837, %v843
      %v850 = vadd.f32 %v838, %v843
      %v851 = vadd.f32 %v839, %v843
      %852 = vst [vmem:[%s333] sm:$0xff] %v844
      %853 = vst [vmem:[%s333 + $0x8] sm:$0xff] %v845
      %854 = vst [vmem:[%s333 + $0x10] sm:$0xff] %v846
      %855 = vst [vmem:[%s333 + $0x18] sm:$0xff] %v847
      %856 = vst [vmem:[%s333 + $0x20] sm:$0xff] %v848
      %857 = vst [vmem:[%s333 + $0x28] sm:$0xff] %v849
      %858 = vst [vmem:[%s333 + $0x30] sm:$0xff] %v850
      %859 = vst [vmem:[%s333 + $0x38] sm:$0xff] %v851
      %s860 = smul.u32 8, %s21
      %p861 = scmp.lt.s32.totalorder %s20, 1
      %s862 = scalar_select %p861, %s20, 1
      %p863 = scmp.lt.s32.totalorder %s860, 7
      %s864 = scalar_select %p863, %s860, 7
      %s865 = smul.addr %s862, 8
      %s866 = sadd.s32 %s864, %s865
      %s867 = smul.addr %s866, 8
      %s868 = scalar_lea.vmem %s5, %s867
      // Predicated region
      $region41: #{ip_adapter_forward.1} parent=39 // pred_check
        %p869 = pneg %p180
      $region42: #{ip_adapter_forward.1} parent=39 // pred_check_branch
        %871 = sbr.rel (%p869) target = $region44
      $region43: #{ip_adapter_forward.1} parent=39 // pred_region
        %s872 = smul.u32 8, %s21
      $region44: #{ip_adapter_forward.1} parent=39 // pred_fallthru
        _
    $region40: #{ip_adapter_forward.1} parent=5 // pred_fallthru
      _
    %p873 = scmp.le.s32.totalorder 2, %s11
    // Predicated region
    $region45: #{ip_adapter_forward.1} parent=5 // pred_check
      %p874 = pneg %p873
    $region46: #{ip_adapter_forward.1} parent=5 // pred_check_branch
      %876 = sbr.rel (%p874) target = $region48
    $region47: #{ip_adapter_forward.1} parent=5 // pred_region
      %s877 = ssub.s32 %s11, 2
      // Predicated region
      $region49: #{ip_adapter_forward.1} parent=47 // pred_check
        %p878 = pneg %p186
      $region50: #{ip_adapter_forward.1} parent=47 // pred_check_branch
        %880 = sbr.rel (%p878) target = $region52
      $region51: #{ip_adapter_forward.1} parent=47 // pred_region
        %s881 = smul.u32 8, %s23
        %p882 = scmp.lt.s32.totalorder %s22, 1
        %s883 = scalar_select %p882, %s22, 1
        %p884 = scmp.lt.s32.totalorder %s881, 7
        %s885 = scalar_select %p884, %s881, 7
        %s886 = smul.addr %s883, 8
        %s887 = sadd.s32 %s885, %s886
        %s888 = smul.addr %s887, 8
        %s889 = scalar_lea.vmem %s5, %s888
      $region52: #{ip_adapter_forward.1} parent=47 // pred_fallthru
        _
    $region48: #{ip_adapter_forward.1} parent=5 // pred_fallthru
      _
  $region6: #{ip_adapter_forward.1} parent=0 // loop_footer
    %s15 = sadd.s32 1, %s11
  $region7: #{ip_adapter_forward.1} parent=0 // loop_footer_branch
    %10 = sbr.rel target = $region3
  $region8: #{ip_adapter_forward.1} parent=0 // loop_exit
    _

// kernel: ip_adapter_forward.1
$region0: #{ip_adapter_forward.1}
  #allocation0 [shape = 'u32[]', space=smem, size = 0x4, offset = 0x4, fixed_abs, tag = 'smem constant byte address 0x4 - core index']
  #allocation1 [shape = 'u32[144,128]{1,0:T(1,128)}', space=vmem, size = 0x12000, scoped, tag = 'internal scratch']
  %s0 = inlined_call_operand.vmem [shape: bf16[2,64,128], index: 0, kind: input, shape index: {}]
  %s1 = inlined_call_operand.vmem [shape: bf16[2,128,128], index: 1, kind: input, shape index: {}]
  %s2 = inlined_call_operand.vmem [shape: f32[2,1,128], index: 2, kind: input, shape index: {}]
  %s3 = inlined_call_operand.vmem [shape: bf16[2,128,128], index: 3, kind: input, shape index: {}]
  %s4 = inlined_call_operand.vmem [shape: f32[2,3,128], index: 4, kind: input, shape index: {}]
  %s5 = inlined_call_operand.vmem [shape: f32[2,64,128], index: 5, kind: output, shape index: {}]
  %s6 = sld [smem:[#allocation0]]
  $region53: #{ip_adapter_forward.1} parent=0
    _
  %s8 = ssub.s32 1, %s6
  %s9 = scalar_select 0, %s8, %s6
  loop: start=0, step=1, limit=4
  $region2: #{ip_adapter_forward.1} parent=0 // loop_pre_header
    _
  $region3: #{ip_adapter_forward.1} parent=0 // loop_header
    %s11 = sphi 0, %s15
    %p12 = scmp.ge.s32.totalorder %s11, 4
    %s18 = sphi 0, %s30
    %s19 = sphi 0, %s26
    %s20 = sphi 0, %s18
    %s21 = sphi 0, %s19
    %s22 = sphi 0, %s20
    %s23 = sphi 0, %s21
    %s35 = sphi 0, %s37
    %s38 = sphi 0, %s35
    %s39 = sphi 0, %s38
    %s55 = sphi 0, %s39
    %s61 = sphi 0, %s63
    %s64 = sphi 0, %s61
    %s65 = sphi 0, %s64
    %s81 = sphi 0, %s65
    %s87 = sphi 0, %s89
    %s90 = sphi 0, %s87
    %s91 = sphi 0, %s90
    %s107 = sphi 0, %s91
    %s113 = sphi 0, %s115
    %s116 = sphi 0, %s113
    %s117 = sphi 0, %s116
    %s133 = sphi 0, %s117
    %s139 = sphi 0, %s141
    %s142 = sphi 0, %s139
    %s143 = sphi 0, %s142
    %s159 = sphi 0, %s143
    %s167 = sphi 0, %s169
    %s170 = sphi 0, %s167
    %s171 = sphi 0, %s170
    %s187 = sphi 0, %s171
  $region4: #{ip_adapter_forward.1} parent=0 // loop_header_branch
    %14 = sbr.rel (%p12) target = $region8
  $region5: #{ip_adapter_forward.1} parent=0 // loop_body
    %s16 = ssub.s32 %s11, 1
    %s17 = ssub.s32 %s11, 2
    %s24 = sadd.s32 1, %s19
    %p25 = scmp.ge.s32.totalorder %s24, 1
    %s26 = scalar_select %p25, 0, %s24
    %s27 = sadd.s32 1, %s18
    %s28 = scalar_select %p25, %s27, %s18
    %p29 = scmp.ge.s32.totalorder %s28, 2
    %s30 = scalar_select %p29, 0, %s28
    %s31 = ssub.s32 %s18, %s30
    %s32 = ssub.s32 %s19, %s26
    %s33 = sor.u32 %s31, %s32
    %p34 = scmp.eq.s32.totalorder %s33, 0
    %s36 = sadd.s32 %s35, 1
    %s37 = scalar_select %p34, %s35, %s36
    %p40 = pneg %p34
    %p41 = scmp.eq.s32.totalorder %s11, 1
    %p42 = por %p40, %p41
    %p43 = scmp.ne.s32.totalorder %s35, %s38
    %p44 = scmp.eq.s32.totalorder %s11, 0
    %p45 = por %p43, %p44
    %p46 = scmp.ne.s32.totalorder %s35, %s38
    %p47 = scmp.eq.s32.totalorder %s16, 1
    %p48 = por %p46, %p47
    %p49 = scmp.ne.s32.totalorder %s38, %s39
    %p50 = scmp.eq.s32.totalorder %s16, 0
    %p51 = por %p49, %p50
    %p52 = scmp.ne.s32.totalorder %s38, %s39
    %p53 = scmp.eq.s32.totalorder %s17, 1
    %p54 = por %p52, %p53
    %p56 = scmp.ne.s32.totalorder %s39, %s55
    %p57 = scmp.eq.s32.totalorder %s17, 0
    %p58 = por %p56, %p57
    %s59 = ssub.s32 %s18, %s30
    %p60 = scmp.eq.s32.totalorder %s59, 0
    %s62 = sadd.s32 %s61, 1
    %s63 = scalar_select %p60, %s61, %s62
    %p66 = pneg %p60
    %p67 = scmp.eq.s32.totalorder %s11, 1
    %p68 = por %p66, %p67
    %p69 = scmp.ne.s32.totalorder %s61, %s64
    %p70 = scmp.eq.s32.totalorder %s11, 0
    %p71 = por %p69, %p70
    %p72 = scmp.ne.s32.totalorder %s61, %s64
    %p73 = scmp.eq.s32.totalorder %s16, 1
    %p74 = por %p72, %p73
    %p75 = scmp.ne.s32.totalorder %s64, %s65
    %p76 = scmp.eq.s32.totalorder %s16, 0
    %p77 = por %p75, %p76
    %p78 = scmp.ne.s32.totalorder %s64, %s65
    %p79 = scmp.eq.s32.totalorder %s17, 1
    %p80 = por %p78, %p79
    %p82 = scmp.ne.s32.totalorder %s65, %s81
    %p83 = scmp.eq.s32.totalorder %s17, 0
    %p84 = por %p82, %p83
    %s85 = ssub.s32 %s18, %s30
    %p86 = scmp.eq.s32.totalorder %s85, 0
    %s88 = sadd.s32 %s87, 1
    %s89 = scalar_select %p86, %s87, %s88
    %p92 = pneg %p86
    %p93 = scmp.eq.s32.totalorder %s11, 1
    %p94 = por %p92, %p93
    %p95 = scmp.ne.s32.totalorder %s87, %s90
    %p96 = scmp.eq.s32.totalorder %s11, 0
    %p97 = por %p95, %p96
    %p98 = scmp.ne.s32.totalorder %s87, %s90
    %p99 = scmp.eq.s32.totalorder %s16, 1
    %p100 = por %p98, %p99
    %p101 = scmp.ne.s32.totalorder %s90, %s91
    %p102 = scmp.eq.s32.totalorder %s16, 0
    %p103 = por %p101, %p102
    %p104 = scmp.ne.s32.totalorder %s90, %s91
    %p105 = scmp.eq.s32.totalorder %s17, 1
    %p106 = por %p104, %p105
    %p108 = scmp.ne.s32.totalorder %s91, %s107
    %p109 = scmp.eq.s32.totalorder %s17, 0
    %p110 = por %p108, %p109
    %s111 = ssub.s32 %s18, %s30
    %p112 = scmp.eq.s32.totalorder %s111, 0
    %s114 = sadd.s32 %s113, 1
    %s115 = scalar_select %p112, %s113, %s114
    %p118 = pneg %p112
    %p119 = scmp.eq.s32.totalorder %s11, 1
    %p120 = por %p118, %p119
    %p121 = scmp.ne.s32.totalorder %s113, %s116
    %p122 = scmp.eq.s32.totalorder %s11, 0
    %p123 = por %p121, %p122
    %p124 = scmp.ne.s32.totalorder %s113, %s116
    %p125 = scmp.eq.s32.totalorder %s16, 1
    %p126 = por %p124, %p125
    %p127 = scmp.ne.s32.totalorder %s116, %s117
    %p128 = scmp.eq.s32.totalorder %s16, 0
    %p129 = por %p127, %p128
    %p130 = scmp.ne.s32.totalorder %s116, %s117
    %p131 = scmp.eq.s32.totalorder %s17, 1
    %p132 = por %p130, %p131
    %p134 = scmp.ne.s32.totalorder %s117, %s133
    %p135 = scmp.eq.s32.totalorder %s17, 0
    %p136 = por %p134, %p135
    %s137 = ssub.s32 %s18, %s30
    %p138 = scmp.eq.s32.totalorder %s137, 0
    %s140 = sadd.s32 %s139, 1
    %s141 = scalar_select %p138, %s139, %s140
    %p144 = pneg %p138
    %p145 = scmp.eq.s32.totalorder %s11, 1
    %p146 = por %p144, %p145
    %p147 = scmp.ne.s32.totalorder %s139, %s142
    %p148 = scmp.eq.s32.totalorder %s11, 0
    %p149 = por %p147, %p148
    %p150 = scmp.ne.s32.totalorder %s139, %s142
    %p151 = scmp.eq.s32.totalorder %s16, 1
    %p152 = por %p150, %p151
    %p153 = scmp.ne.s32.totalorder %s142, %s143
    %p154 = scmp.eq.s32.totalorder %s16, 0
    %p155 = por %p153, %p154
    %p156 = scmp.ne.s32.totalorder %s142, %s143
    %p157 = scmp.eq.s32.totalorder %s17, 1
    %p158 = por %p156, %p157
    %p160 = scmp.ne.s32.totalorder %s143, %s159
    %p161 = scmp.eq.s32.totalorder %s17, 0
    %p162 = por %p160, %p161
    %s163 = ssub.s32 %s18, %s30
    %s164 = ssub.s32 %s19, %s26
    %s165 = sor.u32 %s163, %s164
    %p166 = scmp.eq.s32.totalorder %s165, 0
    %s168 = sadd.s32 %s167, 1
    %s169 = scalar_select %p166, %s167, %s168
    %p172 = pneg %p166
    %p173 = scmp.eq.s32.totalorder %s11, 1
    %p174 = por %p172, %p173
    %p175 = scmp.ne.s32.totalorder %s167, %s170
    %p176 = scmp.eq.s32.totalorder %s11, 0
    %p177 = por %p175, %p176
    %p178 = scmp.ne.s32.totalorder %s167, %s170
    %p179 = scmp.eq.s32.totalorder %s16, 1
    %p180 = por %p178, %p179
    %p181 = scmp.ne.s32.totalorder %s170, %s171
    %p182 = scmp.eq.s32.totalorder %s16, 0
    %p183 = por %p181, %p182
    %p184 = scmp.ne.s32.totalorder %s170, %s171
    %p185 = scmp.eq.s32.totalorder %s17, 1
    %p186 = por %p184, %p185
    %p188 = scmp.ne.s32.totalorder %s171, %s187
    %p189 = scmp.eq.s32.totalorder %s17, 0
    %p190 = por %p188, %p189
    %p191 = scmp.le.s32.totalorder 1, %s11
    %p192 = scmp.lt.s32.totalorder %s11, 3
    %p193 = pnand %p191, %p192
    %p194 = pneg %p193
    // Predicated region
    $region9: #{ip_adapter_forward.1} parent=5 // pred_check
      _
    $region10: #{ip_adapter_forward.1} parent=5 // pred_check_branch
      %196 = sbr.rel (%p193) target = $region12
    $region11: #{ip_adapter_forward.1} parent=5 // pred_region
      %s197 = ssub.s32 %s11, 1
    $region12: #{ip_adapter_forward.1} parent=5 // pred_fallthru
      _
    %p198 = scmp.lt.s32.totalorder %s11, 2
    // Predicated region
    $region13: #{ip_adapter_forward.1} parent=5 // pred_check
      %p199 = pneg %p198
    $region14: #{ip_adapter_forward.1} parent=5 // pred_check_branch
      %201 = sbr.rel (%p199) target = $region16
    $region15: #{ip_adapter_forward.1} parent=5 // pred_region
      // Predicated region
      $region17: #{ip_adapter_forward.1} parent=15 // pred_check
        %p202 = pneg %p45
      $region18: #{ip_adapter_forward.1} parent=15 // pred_check_branch
        %204 = sbr.rel (%p202) target = $region20
      $region19: #{ip_adapter_forward.1} parent=15 // pred_region
        %s205 = smul.u32 8, %s19
        %p206 = scmp.lt.s32.totalorder %s18, 1
        %s207 = scalar_select %p206, %s18, 1
        %p208 = scmp.lt.s32.totalorder %s205, 7
        %s209 = scalar_select %p208, %s205, 7
        %s210 = smul.addr %s207, 8
        %s211 = sadd.s32 %s209, %s210
        %s212 = smul.addr %s211, 4
        %s213 = scalar_lea.vmem %s0, %s212
        %s214 = smul.u32 8, %s19
      $region20: #{ip_adapter_forward.1} parent=15 // pred_fallthru
        _
      // Predicated region
      $region21: #{ip_adapter_forward.1} parent=15 // pred_check
        %p215 = pneg %p71
      $region22: #{ip_adapter_forward.1} parent=15 // pred_check_branch
        %217 = sbr.rel (%p215) target = $region24
      $region23: #{ip_adapter_forward.1} parent=15 // pred_region
        %p218 = scmp.lt.s32.totalorder %s18, 1
        %s219 = scalar_select %p218, %s18, 1
        %s220 = smul.addr %s219, 16
        %s221 = smul.addr %s220, 4
        %s222 = scalar_lea.vmem %s1, %s221
      $region24: #{ip_adapter_forward.1} parent=15 // pred_fallthru
        _
      // Predicated region
      $region25: #{ip_adapter_forward.1} parent=15 // pred_check
        %p223 = pneg %p97
      $region26: #{ip_adapter_forward.1} parent=15 // pred_check_branch
        %225 = sbr.rel (%p223) target = $region28
      $region27: #{ip_adapter_forward.1} parent=15 // pred_region
        %p226 = scmp.lt.s32.totalorder %s18, 1
        %s227 = scalar_select %p226, %s18, 1
        %s228 = scalar_lea.vmem %s2, %s227
      $region28: #{ip_adapter_forward.1} parent=15 // pred_fallthru
        _
      // Predicated region
      $region29: #{ip_adapter_forward.1} parent=15 // pred_check
        %p229 = pneg %p123
      $region30: #{ip_adapter_forward.1} parent=15 // pred_check_branch
        %231 = sbr.rel (%p229) target = $region32
      $region31: #{ip_adapter_forward.1} parent=15 // pred_region
        %p232 = scmp.lt.s32.totalorder %s18, 1
        %s233 = scalar_select %p232, %s18, 1
        %s234 = smul.addr %s233, 16
        %s235 = smul.addr %s234, 4
        %s236 = scalar_lea.vmem %s3, %s235
      $region32: #{ip_adapter_forward.1} parent=15 // pred_fallthru
        _
      // Predicated region
      $region33: #{ip_adapter_forward.1} parent=15 // pred_check
        %p237 = pneg %p149
      $region34: #{ip_adapter_forward.1} parent=15 // pred_check_branch
        %239 = sbr.rel (%p237) target = $region36
      $region35: #{ip_adapter_forward.1} parent=15 // pred_region
        %p240 = scmp.lt.s32.totalorder %s18, 1
        %s241 = scalar_select %p240, %s18, 1
        %s242 = smul.addr %s241, 4
        %s243 = scalar_lea.vmem %s4, %s242
      $region36: #{ip_adapter_forward.1} parent=15 // pred_fallthru
        _
    $region16: #{ip_adapter_forward.1} parent=5 // pred_fallthru
      _
    %p244 = scmp.le.s32.totalorder 1, %s11
    %p245 = scmp.lt.s32.totalorder %s11, 3
    %p246 = pnand %p244, %p245
    %p247 = pneg %p246
    // Predicated region
    $region37: #{ip_adapter_forward.1} parent=5 // pred_check
      _
    $region38: #{ip_adapter_forward.1} parent=5 // pred_check_branch
      %249 = sbr.rel (%p246) target = $region40
    $region39: #{ip_adapter_forward.1} parent=5 // pred_region
      %s250 = ssub.s32 %s11, 1
      %s251 = smul.u32 8, %s21
      %p252 = scmp.lt.s32.totalorder %s20, 1
      %s253 = scalar_select %p252, %s20, 1
      %p254 = scmp.lt.s32.totalorder %s251, 7
      %s255 = scalar_select %p254, %s251, 7
      %s256 = smul.addr %s253, 8
      %s257 = sadd.s32 %s255, %s256
      %s258 = smul.addr %s257, 4
      %s259 = scalar_lea.vmem %s0, %s258
      %p260 = pneg %p51
      %p261 = pneg %p48
      %p262 = scmp.lt.s32.totalorder %s20, 1
      %s263 = scalar_select %p262, %s20, 1
      %s264 = smul.addr %s263, 16
      %s265 = smul.addr %s264, 4
      %s266 = scalar_lea.vmem %s1, %s265
      %p267 = pneg %p77
      %p268 = pneg %p74
      %p269 = scmp.lt.s32.totalorder %s20, 1
      %s270 = scalar_select %p269, %s20, 1
      %s271 = scalar_lea.vmem %s2, %s270
      %p272 = pneg %p103
      %p273 = pneg %p100
      %p274 = scmp.lt.s32.totalorder %s20, 1
      %s275 = scalar_select %p274, %s20, 1
      %s276 = smul.addr %s275, 16
      %s277 = smul.addr %s276, 4
      %s278 = scalar_lea.vmem %s3, %s277
      %p279 = pneg %p129
      %p280 = pneg %p126
      %p281 = scmp.lt.s32.totalorder %s20, 1
      %s282 = scalar_select %p281, %s20, 1
      %s283 = smul.addr %s282, 4
      %s284 = scalar_lea.vmem %s4, %s283
      %p285 = pneg %p155
      %p286 = pneg %p152
      %p287 = pneg %p183
      %p288 = pneg %p180
      %s289 = smul.u32 8, %s21
      %p290 = scmp.lt.s32.totalorder %s20, 1
      %s291 = scalar_select %p290, %s20, 1
      %p292 = scmp.lt.s32.totalorder %s289, 7
      %s293 = scalar_select %p292, %s289, 7
      %s294 = smul.addr %s291, 8
      %s295 = sadd.s32 %s293, %s294
      %s296 = smul.addr %s295, 8
      %s297 = scalar_lea.vmem %s5, %s296
      %s298 = smul.u32 8, %s21
      %p299 = scmp.lt.s32.totalorder %s20, 1
      %s300 = scalar_select %p299, %s20, 1
      %p301 = scmp.lt.s32.totalorder %s298, 7
      %s302 = scalar_select %p301, %s298, 7
      %s303 = smul.addr %s300, 8
      %s304 = sadd.s32 %s302, %s303
      %s305 = smul.addr %s304, 4
      %s306 = scalar_lea.vmem %s0, %s305
      %s307 = smul.u32 8, %s21
      %p308 = scmp.lt.s32.totalorder %s20, 1
      %s309 = scalar_select %p308, %s20, 1
      %s310 = smul.addr %s309, 16
      %s311 = smul.addr %s310, 4
      %s312 = scalar_lea.vmem %s1, %s311
      %p313 = scmp.lt.s32.totalorder %s20, 1
      %s314 = scalar_select %p313, %s20, 1
      %s315 = scalar_lea.vmem %s2, %s314
      %p316 = scmp.lt.s32.totalorder %s20, 1
      %s317 = scalar_select %p316, %s20, 1
      %s318 = smul.addr %s317, 16
      %s319 = smul.addr %s318, 4
      %s320 = scalar_lea.vmem %s3, %s319
      %p321 = scmp.lt.s32.totalorder %s20, 1
      %s322 = scalar_select %p321, %s20, 1
      %s323 = smul.addr %s322, 4
      %s324 = scalar_lea.vmem %s4, %s323
      %s325 = smul.u32 8, %s21
      %p326 = scmp.lt.s32.totalorder %s20, 1
      %s327 = scalar_select %p326, %s20, 1
      %p328 = scmp.lt.s32.totalorder %s325, 7
      %s329 = scalar_select %p328, %s325, 7
      %s330 = smul.addr %s327, 8
      %s331 = sadd.s32 %s329, %s330
      %s332 = smul.addr %s331, 8
      %s333 = scalar_lea.vmem %s5, %s332
      %s334 = smul.u32 8, %s21
      %v336 = vld [vmem:[%s306] sm:$0xf]
      %v337 = vld [vmem:[%s306 + $0x4] sm:$0xf]
      %v338 = vld [vmem:[%s306 + $0x8] sm:$0xf]
      %v339 = vld [vmem:[%s306 + $0xc] sm:$0xf]
      %v340 = vld [vmem:[%s306 + $0x10] sm:$0xf]
      %v341 = vld [vmem:[%s306 + $0x14] sm:$0xf]
      %v342 = vld [vmem:[%s306 + $0x18] sm:$0xf]
      %v343 = vld [vmem:[%s306 + $0x1c] sm:$0xf]
      %v344 = vld [vmem:[%s312] sm:$0xf]
      %v345 = vld [vmem:[%s312 + $0x4] sm:$0xf]
      %v346 = vld [vmem:[%s312 + $0x8] sm:$0xf]
      %v347 = vld [vmem:[%s312 + $0xc] sm:$0xf]
      %v348 = vld [vmem:[%s312 + $0x10] sm:$0xf]
      %v349 = vld [vmem:[%s312 + $0x14] sm:$0xf]
      %v350 = vld [vmem:[%s312 + $0x18] sm:$0xf]
      %v351 = vld [vmem:[%s312 + $0x1c] sm:$0xf]
      %v352 = vld [vmem:[%s312 + $0x20] sm:$0xf]
      %v353 = vld [vmem:[%s312 + $0x24] sm:$0xf]
      %v354 = vld [vmem:[%s312 + $0x28] sm:$0xf]
      %v355 = vld [vmem:[%s312 + $0x2c] sm:$0xf]
      %v356 = vld [vmem:[%s312 + $0x30] sm:$0xf]
      %v357 = vld [vmem:[%s312 + $0x34] sm:$0xf]
      %v358 = vld [vmem:[%s312 + $0x38] sm:$0xf]
      %v359 = vld [vmem:[%s312 + $0x3c] sm:$0xf]
      %v360 = vld [vmem:[%s315] sm:$0x1]
      %v362 = vlaneseq
      %v363 = vshrl.u32 %v362, 7
      %v364 = vsub.s32 0, %v363
      %v365 = vrot.slane %v360, %v364
      %v375 = vunpack.c.l.b16 %v336
      %v376 = vunpack.c.l.b16 %v337
      %v377 = vunpack.c.l.b16 %v338
      %v378 = vunpack.c.l.b16 %v339
      %v379 = vunpack.c.l.b16 %v340
      %v380 = vunpack.c.l.b16 %v341
      %v381 = vunpack.c.l.b16 %v342
      %v382 = vunpack.c.l.b16 %v343
      %v383 = vpack.c.b16 %v376, %v375
      %v384 = vpack.c.b16 %v378, %v377
      %v385 = vpack.c.b16 %v380, %v379
      %v386 = vpack.c.b16 %v382, %v381
      %v407 = vunpack.c.l.b16 %v344
      %v408 = vunpack.c.l.b16 %v345
      %v409 = vunpack.c.l.b16 %v346
      %v410 = vunpack.c.l.b16 %v347
      %v411 = vunpack.c.l.b16 %v348
      %v412 = vunpack.c.l.b16 %v349
      %v413 = vunpack.c.l.b16 %v350
      %v414 = vunpack.c.l.b16 %v351
      %v415 = vunpack.c.l.b16 %v352
      %v416 = vunpack.c.l.b16 %v353
      %v417 = vunpack.c.l.b16 %v354
      %v418 = vunpack.c.l.b16 %v355
      %v419 = vunpack.c.l.b16 %v356
      %v420 = vunpack.c.l.b16 %v357
      %v421 = vunpack.c.l.b16 %v358
      %v422 = vunpack.c.l.b16 %v359
      %v423 = vpack.c.b16 %v408, %v407
      %v424 = vpack.c.b16 %v410, %v409
      %v425 = vpack.c.b16 %v412, %v411
      %v426 = vpack.c.b16 %v414, %v413
      %v427 = vpack.c.b16 %v416, %v415
      %v428 = vpack.c.b16 %v418, %v417
      %v429 = vpack.c.b16 %v420, %v419
      %v430 = vpack.c.b16 %v422, %v421
      %439 = vmatprep.subr.bf16.mxu0 0
      %440 = vmatpush1.bf16.msra.mxu0 %v423
      %441 = vmatprep.subr.bf16.mxu0 0
      %442 = vmatpush1.bf16.msra.mxu0 %v424
      %443 = vmatprep.subr.bf16.mxu0 0
      %444 = vmatpush1.bf16.msra.mxu0 %v425
      %445 = vmatprep.subr.bf16.mxu0 0
      %446 = vmatpush1.bf16.msra.mxu0 %v426
      %447 = vmatprep.subr.bf16.mxu0 0
      %448 = vmatpush1.bf16.msra.mxu0 %v427
      %449 = vmatprep.subr.bf16.mxu0 0
      %450 = vmatpush1.bf16.msra.mxu0 %v428
      %451 = vmatprep.subr.bf16.mxu0 0
      %452 = vmatpush1.bf16.msra.mxu0 %v429
      %453 = vmatprep.subr.bf16.mxu0 0
      %454 = vmatpush1.bf16.msra.mxu0 %v430
      %455 = vmatprep.subr.bf16.mxu0 0
      %456 = vmatpush1.bf16.msra.mxu0 0
      %457 = vmatprep.subr.bf16.mxu0 0
      %458 = vmatpush1.bf16.msra.mxu0 0
      %459 = vmatprep.subr.bf16.mxu0 0
      %460 = vmatpush1.bf16.msra.mxu0 0
      %461 = vmatprep.subr.bf16.mxu0 0
      %462 = vmatpush1.bf16.msra.mxu0 0
      %463 = vmatprep.subr.bf16.mxu0 0
      %464 = vmatpush1.bf16.msra.mxu0 0
      %465 = vmatprep.subr.bf16.mxu0 0
      %466 = vmatpush1.bf16.msra.mxu0 0
      %467 = vmatprep.subr.bf16.mxu0 0
      %468 = vmatpush1.bf16.msra.mxu0 0
      %469 = vmatprep.subr.bf16.mxu0 0
      %470 = vmatpush1.bf16.msra.mxu0 0
      %471 = vmatprep.mubr.bf16.mxu0 0
      %472 = vmatmul.mubr.bf16.gmra.mrb[0].mxu0 %v383
      %v473 = vpop.f32.mrb[0].mxu0
      %v474 = vadd.f32 %v365, %v473
      %v475 = vpop.f32.mrb[0].mxu0
      %v476 = vpop.f32.mrb[0].mxu0
      %v477 = vadd.f32 %v365, %v476
      %v478 = vpop.f32.mrb[0].mxu0
      %479 = vmatprep.mubr.bf16.mxu0 0
      %480 = vmatmul.mubr.bf16.gmra.mrb[0].mxu0 %v384
      %v481 = vpop.f32.mrb[0].mxu0
      %v482 = vadd.f32 %v365, %v481
      %v483 = vpop.f32.mrb[0].mxu0
      %v484 = vpop.f32.mrb[0].mxu0
      %v485 = vadd.f32 %v365, %v484
      %v486 = vpop.f32.mrb[0].mxu0
      %487 = vmatprep.mubr.bf16.mxu0 0
      %488 = vmatmul.mubr.bf16.gmra.mrb[0].mxu0 %v385
      %v489 = vpop.f32.mrb[0].mxu0
      %v490 = vadd.f32 %v365, %v489
      %v491 = vpop.f32.mrb[0].mxu0
      %v492 = vpop.f32.mrb[0].mxu0
      %v493 = vadd.f32 %v365, %v492
      %v494 = vpop.f32.mrb[0].mxu0
      %495 = vmatprep.mubr.bf16.mxu0 0
      %496 = vmatmul.mubr.bf16.gmra.mrb[0].mxu0 %v386
      %v497 = vpop.f32.mrb[0].mxu0
      %v498 = vadd.f32 %v365, %v497
      %v499 = vpop.f32.mrb[0].mxu0
      %v500 = vpop.f32.mrb[0].mxu0
      %v501 = vadd.f32 %v365, %v500
      %v502 = vpop.f32.mrb[0].mxu0
      %503 = vdwg.mxu0
      %v504 = vmul.f32 %v474, %v474
      %v505 = vmul.f32 %v477, %v477
      %v506 = vmul.f32 %v482, %v482
      %v507 = vmul.f32 %v485, %v485
      %v508 = vmul.f32 %v490, %v490
      %v509 = vmul.f32 %v493, %v493
      %v510 = vmul.f32 %v498, %v498
      %v511 = vmul.f32 %v501, %v501
      %v512 = vmul.f32 %v474, %v504
      %v513 = vmul.f32 %v477, %v505
      %v514 = vmul.f32 %v482, %v506
      %v515 = vmul.f32 %v485, %v507
      %v516 = vmul.f32 %v490, %v508
      %v517 = vmul.f32 %v493, %v509
      %v518 = vmul.f32 %v498, %v510
      %v519 = vmul.f32 %v501, %v511
      %v520 = vmul.f32 %v512, 0.044715
      %v521 = vmul.f32 %v513, 0.044715
      %v522 = vmul.f32 %v514, 0.044715
      %v523 = vmul.f32 %v515, 0.044715
      %v524 = vmul.f32 %v516, 0.044715
      %v525 = vmul.f32 %v517, 0.044715
      %v526 = vmul.f32 %v518, 0.044715
      %v527 = vmul.f32 %v519, 0.044715
      %v528 = vadd.f32 %v474, %v520
      %v529 = vadd.f32 %v477, %v521
      %v530 = vadd.f32 %v482, %v522
      %v531 = vadd.f32 %v485, %v523
      %v532 = vadd.f32 %v490, %v524
      %v533 = vadd.f32 %v493, %v525
      %v534 = vadd.f32 %v498, %v526
      %v535 = vadd.f32 %v501, %v527
      %v536 = vmul.f32 %v528, 0.7978846
      %v537 = vmul.f32 %v529, 0.7978846
      %v538 = vmul.f32 %v530, 0.7978846
      %v539 = vmul.f32 %v531, 0.7978846
      %v540 = vmul.f32 %v532, 0.7978846
      %v541 = vmul.f32 %v533, 0.7978846
      %v542 = vmul.f32 %v534, 0.7978846
      %v543 = vmul.f32 %v535, 0.7978846
      %v544 = vtanh.pop %v536
      %v545 = vtanh.pop %v537
      %v546 = vtanh.pop %v538
      %v547 = vtanh.pop %v539
      %v548 = vtanh.pop %v540
      %v549 = vtanh.pop %v541
      %v550 = vtanh.pop %v542
      %v551 = vtanh.pop %v543
      %v552 = vadd.f32 %v544, 1.0
      %v553 = vadd.f32 %v545, 1.0
      %v554 = vadd.f32 %v546, 1.0
      %v555 = vadd.f32 %v547, 1.0
      %v556 = vadd.f32 %v548, 1.0
      %v557 = vadd.f32 %v549, 1.0
      %v558 = vadd.f32 %v550, 1.0
      %v559 = vadd.f32 %v551, 1.0
      %v560 = vmul.f32 %v552, 0.5
      %v561 = vmul.f32 %v553, 0.5
      %v562 = vmul.f32 %v554, 0.5
      %v563 = vmul.f32 %v555, 0.5
      %v564 = vmul.f32 %v556, 0.5
      %v565 = vmul.f32 %v557, 0.5
      %v566 = vmul.f32 %v558, 0.5
      %v567 = vmul.f32 %v559, 0.5
      %v568 = vmul.f32 %v474, %v560
      %v569 = vmul.f32 %v477, %v561
      %v570 = vmul.f32 %v482, %v562
      %v571 = vmul.f32 %v485, %v563
      %v572 = vmul.f32 %v490, %v564
      %v573 = vmul.f32 %v493, %v565
      %v574 = vmul.f32 %v498, %v566
      %v575 = vmul.f32 %v501, %v567
      %v576 = vpack.c.bf16 %v569, %v568
      %v577 = vpack.c.bf16 %v571, %v570
      %v578 = vpack.c.bf16 %v573, %v572
      %v579 = vpack.c.bf16 %v575, %v574
      %v580 = vld [vmem:[%s320] sm:$0xf]
      %v581 = vld [vmem:[%s320 + $0x4] sm:$0xf]
      %v582 = vld [vmem:[%s320 + $0x8] sm:$0xf]
      %v583 = vld [vmem:[%s320 + $0xc] sm:$0xf]
      %v584 = vld [vmem:[%s320 + $0x10] sm:$0xf]
      %v585 = vld [vmem:[%s320 + $0x14] sm:$0xf]
      %v586 = vld [vmem:[%s320 + $0x18] sm:$0xf]
      %v587 = vld [vmem:[%s320 + $0x1c] sm:$0xf]
      %v588 = vld [vmem:[%s320 + $0x20] sm:$0xf]
      %v589 = vld [vmem:[%s320 + $0x24] sm:$0xf]
      %v590 = vld [vmem:[%s320 + $0x28] sm:$0xf]
      %v591 = vld [vmem:[%s320 + $0x2c] sm:$0xf]
      %v592 = vld [vmem:[%s320 + $0x30] sm:$0xf]
      %v593 = vld [vmem:[%s320 + $0x34] sm:$0xf]
      %v594 = vld [vmem:[%s320 + $0x38] sm:$0xf]
      %v595 = vld [vmem:[%s320 + $0x3c] sm:$0xf]
      %v596 = vld [vmem:[%s324] sm:$0x1]
      %v597 = vld [vmem:[%s324 + $0x1] sm:$0x1]
      %v598 = vld [vmem:[%s324 + $0x2] sm:$0x1]
      %v599 = vlaneseq
      %v600 = vshrl.u32 %v599, 7
      %v601 = vsub.s32 0, %v600
      %v602 = vrot.slane %v596, %v601
      %v619 = vunpack.c.l.b16 %v580
      %v620 = vunpack.c.l.b16 %v581
      %v621 = vunpack.c.l.b16 %v582
      %v622 = vunpack.c.l.b16 %v583
      %v623 = vunpack.c.l.b16 %v584
      %v624 = vunpack.c.l.b16 %v585
      %v625 = vunpack.c.l.b16 %v586
      %v626 = vunpack.c.l.b16 %v587
      %v627 = vunpack.c.l.b16 %v588
      %v628 = vunpack.c.l.b16 %v589
      %v629 = vunpack.c.l.b16 %v590
      %v630 = vunpack.c.l.b16 %v591
      %v631 = vunpack.c.l.b16 %v592
      %v632 = vunpack.c.l.b16 %v593
      %v633 = vunpack.c.l.b16 %v594
      %v634 = vunpack.c.l.b16 %v595
      %v635 = vpack.c.b16 %v620, %v619
      %v636 = vpack.c.b16 %v622, %v621
      %v637 = vpack.c.b16 %v624, %v623
      %v638 = vpack.c.b16 %v626, %v625
      %v639 = vpack.c.b16 %v628, %v627
      %v640 = vpack.c.b16 %v630, %v629
      %v641 = vpack.c.b16 %v632, %v631
      %v642 = vpack.c.b16 %v634, %v633
      %651 = vmatprep.subr.bf16.mxu0 0
      %652 = vmatpush1.bf16.msra.mxu0 %v635
      %653 = vmatprep.subr.bf16.mxu0 0
      %654 = vmatpush1.bf16.msra.mxu0 %v636
      %655 = vmatprep.subr.bf16.mxu0 0
      %656 = vmatpush1.bf16.msra.mxu0 %v637
      %657 = vmatprep.subr.bf16.mxu0 0
      %658 = vmatpush1.bf16.msra.mxu0 %v638
      %659 = vmatprep.subr.bf16.mxu0 0
      %660 = vmatpush1.bf16.msra.mxu0 %v639
      %661 = vmatprep.subr.bf16.mxu0 0
      %662 = vmatpush1.bf16.msra.mxu0 %v640
      %663 = vmatprep.subr.bf16.mxu0 0
      %664 = vmatpush1.bf16.msra.mxu0 %v641
      %665 = vmatprep.subr.bf16.mxu0 0
      %666 = vmatpush1.bf16.msra.mxu0 %v642
      %667 = vmatprep.subr.bf16.mxu0 0
      %668 = vmatpush1.bf16.msra.mxu0 0
      %669 = vmatprep.subr.bf16.mxu0 0
      %670 = vmatpush1.bf16.msra.mxu0 0
      %671 = vmatprep.subr.bf16.mxu0 0
      %672 = vmatpush1.bf16.msra.mxu0 0
      %673 = vmatprep.subr.bf16.mxu0 0
      %674 = vmatpush1.bf16.msra.mxu0 0
      %675 = vmatprep.subr.bf16.mxu0 0
      %676 = vmatpush1.bf16.msra.mxu0 0
      %677 = vmatprep.subr.bf16.mxu0 0
      %678 = vmatpush1.bf16.msra.mxu0 0
      %679 = vmatprep.subr.bf16.mxu0 0
      %680 = vmatpush1.bf16.msra.mxu0 0
      %681 = vmatprep.subr.bf16.mxu0 0
      %682 = vmatpush1.bf16.msra.mxu0 0
      %683 = vmatprep.mubr.bf16.mxu0 0
      %684 = vmatmul.mubr.bf16.gmra.mrb[0].mxu0 %v576
      %v685 = vpop.f32.mrb[0].mxu0
      %v686 = vadd.f32 %v602, %v685
      %v687 = vpop.f32.mrb[0].mxu0
      %v688 = vpop.f32.mrb[0].mxu0
      %v689 = vadd.f32 %v602, %v688
      %v690 = vpop.f32.mrb[0].mxu0
      %691 = vmatprep.mubr.bf16.mxu0 0
      %692 = vmatmul.mubr.bf16.gmra.mrb[0].mxu0 %v577
      %v693 = vpop.f32.mrb[0].mxu0
      %v694 = vadd.f32 %v602, %v693
      %v695 = vpop.f32.mrb[0].mxu0
      %v696 = vpop.f32.mrb[0].mxu0
      %v697 = vadd.f32 %v602, %v696
      %v698 = vpop.f32.mrb[0].mxu0
      %699 = vmatprep.mubr.bf16.mxu0 0
      %700 = vmatmul.mubr.bf16.gmra.mrb[0].mxu0 %v578
      %v701 = vpop.f32.mrb[0].mxu0
      %v702 = vadd.f32 %v602, %v701
      %v703 = vpop.f32.mrb[0].mxu0
      %v704 = vpop.f32.mrb[0].mxu0
      %v705 = vadd.f32 %v602, %v704
      %v706 = vpop.f32.mrb[0].mxu0
      %707 = vmatprep.mubr.bf16.mxu0 0
      %708 = vmatmul.mubr.bf16.gmra.mrb[0].mxu0 %v579
      %v709 = vpop.f32.mrb[0].mxu0
      %v710 = vadd.f32 %v602, %v709
      %v711 = vpop.f32.mrb[0].mxu0
      %v712 = vpop.f32.mrb[0].mxu0
      %v713 = vadd.f32 %v602, %v712
      %v714 = vpop.f32.mrb[0].mxu0
      %715 = vdwg.mxu0
      %716 = vadd.xlane.f32.xlu0 %v686
      %v717 = vpop.xlane.xlu0 %716
      %718 = vadd.xlane.f32.xlu0 %v689
      %v719 = vpop.xlane.xlu0 %718
      %720 = vadd.xlane.f32.xlu0 %v694
      %v721 = vpop.xlane.xlu0 %720
      %722 = vadd.xlane.f32.xlu0 %v697
      %v723 = vpop.xlane.xlu0 %722
      %724 = vadd.xlane.f32.xlu0 %v702
      %v725 = vpop.xlane.xlu0 %724
      %726 = vadd.xlane.f32.xlu0 %v705
      %v727 = vpop.xlane.xlu0 %726
      %728 = vadd.xlane.f32.xlu0 %v710
      %v729 = vpop.xlane.xlu0 %728
      %730 = vadd.xlane.f32.xlu0 %v713
      %v731 = vpop.xlane.xlu0 %730
      %v732 = vmul.f32 %v717, 0.015625
      %v733 = vmul.f32 %v719, 0.015625
      %v734 = vmul.f32 %v721, 0.015625
      %v735 = vmul.f32 %v723, 0.015625
      %v736 = vmul.f32 %v725, 0.015625
      %v737 = vmul.f32 %v727, 0.015625
      %v738 = vmul.f32 %v729, 0.015625
      %v739 = vmul.f32 %v731, 0.015625
      %v740 = vsub.f32 %v686, %v732
      %v741 = vsub.f32 %v689, %v733
      %v742 = vsub.f32 %v694, %v734
      %v743 = vsub.f32 %v697, %v735
      %v744 = vsub.f32 %v702, %v736
      %v745 = vsub.f32 %v705, %v737
      %v746 = vsub.f32 %v710, %v738
      %v747 = vsub.f32 %v713, %v739
      %v748 = vmul.f32 %v740, %v740
      %v749 = vmul.f32 %v741, %v741
      %v750 = vmul.f32 %v742, %v742
      %v751 = vmul.f32 %v743, %v743
      %v752 = vmul.f32 %v744, %v744
      %v753 = vmul.f32 %v745, %v745
      %v754 = vmul.f32 %v746, %v746
      %v755 = vmul.f32 %v747, %v747
      %756 = vadd.xlane.f32.xlu0 %v748
      %v757 = vpop.xlane.xlu0 %756
      %758 = vadd.xlane.f32.xlu0 %v749
      %v759 = vpop.xlane.xlu0 %758
      %760 = vadd.xlane.f32.xlu0 %v750
      %v761 = vpop.xlane.xlu0 %760
      %762 = vadd.xlane.f32.xlu0 %v751
      %v763 = vpop.xlane.xlu0 %762
      %764 = vadd.xlane.f32.xlu0 %v752
      %v765 = vpop.xlane.xlu0 %764
      %766 = vadd.xlane.f32.xlu0 %v753
      %v767 = vpop.xlane.xlu0 %766
      %768 = vadd.xlane.f32.xlu0 %v754
      %v769 = vpop.xlane.xlu0 %768
      %770 = vadd.xlane.f32.xlu0 %v755
      %v771 = vpop.xlane.xlu0 %770
      %v772 = vmul.f32 %v732, %v732
      %v773 = vmul.f32 %v733, %v733
      %v774 = vmul.f32 %v734, %v734
      %v775 = vmul.f32 %v735, %v735
      %v776 = vmul.f32 %v736, %v736
      %v777 = vmul.f32 %v737, %v737
      %v778 = vmul.f32 %v738, %v738
      %v779 = vmul.f32 %v739, %v739
      %v780 = vmul.f32 %v772, 64.0
      %v781 = vmul.f32 %v773, 64.0
      %v782 = vmul.f32 %v774, 64.0
      %v783 = vmul.f32 %v775, 64.0
      %v784 = vmul.f32 %v776, 64.0
      %v785 = vmul.f32 %v777, 64.0
      %v786 = vmul.f32 %v778, 64.0
      %v787 = vmul.f32 %v779, 64.0
      %v788 = vsub.f32 %v757, %v780
      %v789 = vsub.f32 %v759, %v781
      %v790 = vsub.f32 %v761, %v782
      %v791 = vsub.f32 %v763, %v783
      %v792 = vsub.f32 %v765, %v784
      %v793 = vsub.f32 %v767, %v785
      %v794 = vsub.f32 %v769, %v786
      %v795 = vsub.f32 %v771, %v787
      %v796 = vmul.f32 %v788, 0.015625
      %v797 = vmul.f32 %v789, 0.015625
      %v798 = vmul.f32 %v790, 0.015625
      %v799 = vmul.f32 %v791, 0.015625
      %v800 = vmul.f32 %v792, 0.015625
      %v801 = vmul.f32 %v793, 0.015625
      %v802 = vmul.f32 %v794, 0.015625
      %v803 = vmul.f32 %v795, 0.015625
      %v804 = vadd.f32 %v796, 1e-05
      %v805 = vadd.f32 %v797, 1e-05
      %v806 = vadd.f32 %v798, 1e-05
      %v807 = vadd.f32 %v799, 1e-05
      %v808 = vadd.f32 %v800, 1e-05
      %v809 = vadd.f32 %v801, 1e-05
      %v810 = vadd.f32 %v802, 1e-05
      %v811 = vadd.f32 %v803, 1e-05
      %v812 = vrsqrt.pop %v804
      %v813 = vrsqrt.pop %v805
      %v814 = vrsqrt.pop %v806
      %v815 = vrsqrt.pop %v807
      %v816 = vrsqrt.pop %v808
      %v817 = vrsqrt.pop %v809
      %v818 = vrsqrt.pop %v810
      %v819 = vrsqrt.pop %v811
      %v820 = vmul.f32 %v740, %v812
      %v821 = vmul.f32 %v741, %v813
      %v822 = vmul.f32 %v742, %v814
      %v823 = vmul.f32 %v743, %v815
      %v824 = vmul.f32 %v744, %v816
      %v825 = vmul.f32 %v745, %v817
      %v826 = vmul.f32 %v746, %v818
      %v827 = vmul.f32 %v747, %v819
      %v828 = vlaneseq
      %v829 = vshrl.u32 %v828, 7
      %v830 = vsub.s32 0, %v829
      %v831 = vrot.slane %v597, %v830
      %v832 = vmul.f32 %v820, %v831
      %v833 = vmul.f32 %v821, %v831
      %v834 = vmul.f32 %v822, %v831
      %v835 = vmul.f32 %v823, %v831
      %v836 = vmul.f32 %v824, %v831
      %v837 = vmul.f32 %v825, %v831
      %v838 = vmul.f32 %v826, %v831
      %v839 = vmul.f32 %v827, %v831
      %v840 = vlaneseq
      %v841 = vshrl.u32 %v840, 7
      %v842 = vsub.s32 0, %v841
      %v843 = vrot.slane %v598, %v842
      %v844 = vadd.f32 %v832, %v843
      %v845 = vadd.f32 %v833, %v843
      %v846 = vadd.f32 %v834, %v843
      %v847 = vadd.f32 %v835, %v843
      %v848 = vadd.f32 %v836, %v843
      %v849 = vadd.f32 %v837, %v843
      %v850 = vadd.f32 %v838, %v843
      %v851 = vadd.f32 %v839, %v843
      %852 = vst [vmem:[%s333] sm:$0xff] %v844
      %853 = vst [vmem:[%s333 + $0x8] sm:$0xff] %v845
      %854 = vst [vmem:[%s333 + $0x10] sm:$0xff] %v846
      %855 = vst [vmem:[%s333 + $0x18] sm:$0xff] %v847
      %856 = vst [vmem:[%s333 + $0x20] sm:$0xff] %v848
      %857 = vst [vmem:[%s333 + $0x28] sm:$0xff] %v849
      %858 = vst [vmem:[%s333 + $0x30] sm:$0xff] %v850
      %859 = vst [vmem:[%s333 + $0x38] sm:$0xff] %v851
      %s860 = smul.u32 8, %s21
      %p861 = scmp.lt.s32.totalorder %s20, 1
      %s862 = scalar_select %p861, %s20, 1
      %p863 = scmp.lt.s32.totalorder %s860, 7
      %s864 = scalar_select %p863, %s860, 7
      %s865 = smul.addr %s862, 8
      %s866 = sadd.s32 %s864, %s865
      %s867 = smul.addr %s866, 8
      %s868 = scalar_lea.vmem %s5, %s867
      // Predicated region
      $region41: #{ip_adapter_forward.1} parent=39 // pred_check
        %p869 = pneg %p180
      $region42: #{ip_adapter_forward.1} parent=39 // pred_check_branch
        %871 = sbr.rel (%p869) target = $region44
      $region43: #{ip_adapter_forward.1} parent=39 // pred_region
        %s872 = smul.u32 8, %s21
      $region44: #{ip_adapter_forward.1} parent=39 // pred_fallthru
        _
    $region40: #{ip_adapter_forward.1} parent=5 // pred_fallthru
      _
    %p873 = scmp.le.s32.totalorder 2, %s11
    // Predicated region
    $region45: #{ip_adapter_forward.1} parent=5 // pred_check
      %p874 = pneg %p873
    $region46: #{ip_adapter_forward.1} parent=5 // pred_check_branch
      %876 = sbr.rel (%p874) target = $region48
    $region47: #{ip_adapter_forward.1} parent=5 // pred_region
      %s877 = ssub.s32 %s11, 2
      // Predicated region
      $region49: #{ip_adapter_forward.1} parent=47 // pred_check
        %p878 = pneg %p186
      $region50: #{ip_adapter_forward.1} parent=47 // pred_check_branch
        %880 = sbr.rel (%p878) target = $region52
      $region51: #{ip_adapter_forward.1} parent=47 // pred_region
        %s881 = smul.u32 8, %s23
        %p882 = scmp.lt.s32.totalorder %s22, 1
        %s883 = scalar_select %p882, %s22, 1
        %p884 = scmp.lt.s32.totalorder %s881, 7
        %s885 = scalar_select %p884, %s881, 7
        %s886 = smul.addr %s883, 8
        %s887 = sadd.s32 %s885, %s886
        %s888 = smul.addr %s887, 8
        %s889 = scalar_lea.vmem %s5, %s888
      $region52: #{ip_adapter_forward.1} parent=47 // pred_fallthru
        _
    $region48: #{ip_adapter_forward.1} parent=5 // pred_fallthru
      _
  $region6: #{ip_adapter_forward.1} parent=0 // loop_footer
    %s15 = sadd.s32 1, %s11
  $region7: #{ip_adapter_forward.1} parent=0 // loop_footer_branch
    %10 = sbr.rel target = $region3
  $region8: #{ip_adapter_forward.1} parent=0 // loop_exit
    _

</llo_original>
